<compile_context>
chip_gen: v6e
topology: v6e:2x2x1
jax: 0.10.0
libtpu: 0.0.40
codegen_flags: <defaults>
</compile_context>

<pallas_src>
import functools
import math

import jax
import jax.numpy as jnp
from jax.experimental import pallas as pl
from jax.experimental.pallas import tpu as pltpu


# ---------------------------------------------------------------------------
# Fully fused per-batch kernel: projections + decoupled attention + dense + LN
# ---------------------------------------------------------------------------

def _dif_layer_kernel(*refs, feat_num, n_heads, scale, eps):
    idx = 0
    x_ref = refs[idx]; idx += 1                     # (L, H)
    pos_ref = refs[idx]; idx += 1                   # (L, H)
    attr_refs = refs[idx:idx + feat_num]; idx += feat_num   # each (L, A_f)
    mask_ref = refs[idx]; idx += 1                  # (L, L)
    w_qkv_ref, b_qkv_ref = refs[idx], refs[idx + 1]; idx += 2   # (H,3H), (1,3H)
    w_p_ref, b_p_ref = refs[idx], refs[idx + 1]; idx += 2       # (H,2H), (1,2H)
    attr_wb = refs[idx:idx + 2 * feat_num]; idx += 2 * feat_num  # (A,2A),(1,2A) per feat
    w_d_ref, b_d_ref, g_ref, be_ref = refs[idx:idx + 4]; idx += 4
    o_ref = refs[idx]                               # (L, H)

    x = x_ref[...]                                  # (L, H) residual + projection input
    H = x.shape[-1]
    dh = H // n_heads

    # ---- fused input-side projections (one matmul per source tensor) -------
    qkv = jnp.dot(x, w_qkv_ref[...], preferred_element_type=jnp.float32) + b_qkv_ref[...]
    pqk = jnp.dot(pos_ref[...], w_p_ref[...],
                  preferred_element_type=jnp.float32) + b_p_ref[...]
    attr_qk = []
    for f in range(feat_num):
        attr_qk.append(
            jnp.dot(attr_refs[f][...], attr_wb[2 * f][...],
                    preferred_element_type=jnp.float32) + attr_wb[2 * f + 1][...])

    mask = mask_ref[...]                            # (L, L)

    # ---- decoupled attention, one concatenated-feature contraction per head
    ctx_heads = []
    for h in range(n_heads):
        q_parts = [qkv[:, h * dh:(h + 1) * dh], pqk[:, h * dh:(h + 1) * dh]]
        k_parts = [qkv[:, H + h * dh:H + (h + 1) * dh],
                   pqk[:, H + h * dh:H + (h + 1) * dh]]
        for f in range(feat_num):
            A = attr_qk[f].shape[-1] // 2
            dha = A // n_heads
            q_parts.append(attr_qk[f][:, h * dha:(h + 1) * dha])
            k_parts.append(attr_qk[f][:, A + h * dha:A + (h + 1) * dha])
        qh = jnp.concatenate(q_parts, axis=-1)      # (L, Dc)
        kh = jnp.concatenate(k_parts, axis=-1)      # (L, Dc)
        vh = qkv[:, 2 * H + h * dh:2 * H + (h + 1) * dh]   # (L, dh)

        # item + pos + attribute scores in one contraction over the feature axis.
        s = jax.lax.dot_general(qh, kh, (((1,), (1,)), ((), ())),
                                preferred_element_type=jnp.float32)   # (L, L)
        s = s * scale + mask
        s = s - jnp.max(s, axis=-1, keepdims=True)
        p = jnp.exp(s)
        p = p * pl.reciprocal(jnp.sum(p, axis=-1, keepdims=True), approx=True)
        ctx_heads.append(jnp.dot(p, vh, preferred_element_type=jnp.float32))

    ctx = jnp.concatenate(ctx_heads, axis=-1)       # (L, H) lane-dense

    # ---- output dense + residual add + LayerNorm ----------------------------
    y = jnp.dot(ctx, w_d_ref[...], preferred_element_type=jnp.float32) + b_d_ref[...] + x
    mean = jnp.mean(y, axis=-1, keepdims=True)
    var = jnp.mean((y - mean) ** 2, axis=-1, keepdims=True)
    nrm = (y - mean) * jax.lax.rsqrt(var + eps)
    o_ref[...] = (nrm * g_ref[...] + be_ref[...]).astype(o_ref.dtype)


def dif_multi_head_attention(params, input_tensor, attribute_table,
                             position_embedding, attention_mask,
                             n_heads, layer_norm_eps=1e-12):
    """fusion_type='sum' forward pass; one pallas_call, grid over the batch."""
    B, L, H = input_tensor.shape
    feat_num = len(attribute_table)
    dh = H // n_heads

    attrs = [attribute_table[f][:, :, 0, :] for f in range(feat_num)]   # squeeze(-2)

    def const_spec(arr):
        nd = arr.ndim
        return pl.BlockSpec(arr.shape, lambda b, _nd=nd: (0,) * _nd)

    in_specs = [
        pl.BlockSpec((None, L, H), lambda b: (b, 0, 0)),      # input_tensor
        pl.BlockSpec((None, L, H), lambda b: (b, 0, 0)),      # position_embedding
    ]
    for a in attrs:
        A = a.shape[-1]
        in_specs.append(pl.BlockSpec((None, L, A), lambda b: (b, 0, 0)))
    in_specs.append(pl.BlockSpec((None, None, L, L), lambda b: (b, 0, 0, 0)))  # mask

    weight_args = [params["w_qkv"], params["b_qkv"].reshape(1, -1),
                   params["w_p"], params["b_p"].reshape(1, -1)]
    for f in range(feat_num):
        weight_args += [params["w_attr"][f], params["b_attr"][f].reshape(1, -1)]
    weight_args += [params["w_d"], params["b_d"].reshape(1, -1),
                    params["ln_g"].reshape(1, -1), params["ln_b"].reshape(1, -1)]
    in_specs += [const_spec(w) for w in weight_args]

    out = pl.pallas_call(
        functools.partial(_dif_layer_kernel, feat_num=feat_num, n_heads=n_heads,
                          scale=1.0 / math.sqrt(dh), eps=layer_norm_eps),
        out_shape=jax.ShapeDtypeStruct((B, L, H), input_tensor.dtype),
        grid=(B,),
        in_specs=in_specs,
        out_specs=pl.BlockSpec((None, L, H), lambda b: (b, 0, 0)),
        compiler_params=pltpu.CompilerParams(dimension_semantics=("parallel",)),
    )(input_tensor, position_embedding, *attrs, attention_mask, *weight_args)
    return out


# ---------------------------------------------------------------------------
# Parameter construction (deterministic, synthetic; Q/K/V weights pre-fused)
# ---------------------------------------------------------------------------

def _init_linear(key, fan_in, fan_out):
    kw, kb = jax.random.split(key)
    w = jax.random.normal(kw, (fan_in, fan_out), jnp.float32) * 0.02
    b = jax.random.normal(kb, (fan_out,), jnp.float32) * 0.02
    return w, b


def init_params(key, n_heads, hidden_size, attribute_hidden_size, feat_num):
    keys = jax.random.split(key, 6 + 2 * feat_num)
    wq, bq = _init_linear(keys[0], hidden_size, hidden_size)
    wk, bk = _init_linear(keys[1], hidden_size, hidden_size)
    wv, bv = _init_linear(keys[2], hidden_size, hidden_size)
    wqp, bqp = _init_linear(keys[3], hidden_size, hidden_size)
    wkp, bkp = _init_linear(keys[4], hidden_size, hidden_size)
    w_attr, b_attr = [], []
    for f in range(feat_num):
        a = attribute_hidden_size[f]
        wqa, bqa = _init_linear(keys[5 + 2 * f], a, a)
        wka, bka = _init_linear(keys[6 + 2 * f], a, a)
        w_attr.append(jnp.concatenate([wqa, wka], axis=1))      # (A, 2A)
        b_attr.append(jnp.concatenate([bqa, bka]))
    wd, bd = _init_linear(keys[5 + 2 * feat_num], hidden_size, hidden_size)
    return {
        "w_qkv": jnp.concatenate([wq, wk, wv], axis=1),          # (H, 3H)
        "b_qkv": jnp.concatenate([bq, bk, bv]),
        "w_p": jnp.concatenate([wqp, wkp], axis=1),              # (H, 2H)
        "b_p": jnp.concatenate([bqp, bkp]),
        "w_attr": w_attr,
        "b_attr": b_attr,
        "w_d": wd,
        "b_d": bd,
        "ln_g": jnp.ones((hidden_size,), jnp.float32),
        "ln_b": jnp.zeros((hidden_size,), jnp.float32),
    }


# ---------------------------------------------------------------------------
# Pure-JAX reference (fusion_type='sum', dropout=identity) for correctness
# ---------------------------------------------------------------------------

def _reference(params, x, attribute_table, pos, mask, n_heads, eps):
    hp = jax.lax.Precision.HIGHEST
    B, L, H = x.shape
    dh = H // n_heads

    def heads(t, d):
        return t.reshape(B, L, n_heads, d).transpose(0, 2, 1, 3)

    qkv = jnp.einsum("ble,eo->blo", x, params["w_qkv"], precision=hp) + params["b_qkv"]
    q_i, k_i, v_i = (heads(qkv[..., :H], dh), heads(qkv[..., H:2 * H], dh),
                     heads(qkv[..., 2 * H:], dh))
    pqk = jnp.einsum("ble,eo->blo", pos, params["w_p"], precision=hp) + params["b_p"]
    q_p, k_p = heads(pqk[..., :H], dh), heads(pqk[..., H:], dh)

    scores = (jnp.einsum("bhqd,bhkd->bhqk", q_i, k_i, precision=hp)
              + jnp.einsum("bhqd,bhkd->bhqk", q_p, k_p, precision=hp))
    for f, a4 in enumerate(attribute_table):
        a = a4[:, :, 0, :]
        A = a.shape[-1]
        dha = A // n_heads
        aqk = (jnp.einsum("ble,eo->blo", a, params["w_attr"][f], precision=hp)
               + params["b_attr"][f])
        q_a, k_a = heads(aqk[..., :A], dha), heads(aqk[..., A:], dha)
        scores = scores + jnp.einsum("bhqd,bhkd->bhqk", q_a, k_a, precision=hp)

    scores = scores / math.sqrt(dh) + mask
    probs = jax.nn.softmax(scores, axis=-1)
    ctx = jnp.einsum("bhqk,bhkd->bhqd", probs, v_i, precision=hp)
    ctx = ctx.transpose(0, 2, 1, 3).reshape(B, L, H)
    y = jnp.einsum("ble,eo->blo", ctx, params["w_d"], precision=hp) + params["b_d"] + x
    mean = y.mean(-1, keepdims=True)
    var = ((y - mean) ** 2).mean(-1, keepdims=True)
    return (y - mean) / jnp.sqrt(var + eps) * params["ln_g"] + params["ln_b"]


# ---------------------------------------------------------------------------
# Main
# ---------------------------------------------------------------------------

if __name__ == "__main__":
    n_heads = 2
    hidden_size = 32
    attribute_hidden_size = [32]
    feat_num = 1
    layer_norm_eps = 1e-12
    B, L = 2, 8            # max_len = L

    key = jax.random.PRNGKey(0)
    k_par, k_h, k_a, k_p = jax.random.split(key, 4)

    params = init_params(k_par, n_heads, hidden_size, attribute_hidden_size, feat_num)

    hidden_states = jax.random.normal(k_h, (B, L, hidden_size), jnp.float32)
    attribute_hidden_states = [
        jax.random.normal(k_a, (B, L, 1, attribute_hidden_size[0]), jnp.float32)
    ]
    position_embedding = jax.random.normal(k_p, (B, L, hidden_size), jnp.float32)

    # extended causal attention mask: 0 where attended, -10000 where masked
    causal = jnp.tril(jnp.ones((L, L), jnp.float32))
    attention_mask = ((1.0 - causal) * -10000.0)[None, None, :, :]
    attention_mask = jnp.broadcast_to(attention_mask, (B, 1, L, L))

    forward = jax.jit(functools.partial(dif_multi_head_attention,
                                        n_heads=n_heads,
                                        layer_norm_eps=layer_norm_eps))
    out = forward(params, hidden_states, attribute_hidden_states,
                  position_embedding, attention_mask)
    jax.block_until_ready(out)
    assert out.shape == (B, L, hidden_size)

    ref = _reference(params, hidden_states, attribute_hidden_states,
                     position_embedding, attention_mask, n_heads, layer_norm_eps)
    assert jnp.allclose(out, ref, atol=2e-2, rtol=2e-2)
    print("KERNEL_OK")
</pallas_src>

<mosaic_0001>
module attributes {stable_mosaic.version = 11 : i64} {
  func.func @_dif_layer_kernel(%arg0: i32, %arg1: memref<1x8x32xf32, #tpu.memory_space<vmem>>, %arg2: memref<1x8x32xf32, #tpu.memory_space<vmem>>, %arg3: memref<1x8x32xf32, #tpu.memory_space<vmem>>, %arg4: memref<1x1x8x8xf32, #tpu.memory_space<vmem>>, %arg5: memref<32x96xf32, #tpu.memory_space<vmem>>, %arg6: memref<1x96xf32, #tpu.memory_space<vmem>>, %arg7: memref<32x64xf32, #tpu.memory_space<vmem>>, %arg8: memref<1x64xf32, #tpu.memory_space<vmem>>, %arg9: memref<32x64xf32, #tpu.memory_space<vmem>>, %arg10: memref<1x64xf32, #tpu.memory_space<vmem>>, %arg11: memref<32x32xf32, #tpu.memory_space<vmem>>, %arg12: memref<1x32xf32, #tpu.memory_space<vmem>>, %arg13: memref<1x32xf32, #tpu.memory_space<vmem>>, %arg14: memref<1x32xf32, #tpu.memory_space<vmem>>, %arg15: memref<1x8x32xf32, #tpu.memory_space<vmem>>) attributes {dimension_semantics = [#tpu.dimension_semantics<parallel>], iteration_bounds = array<i64: 2>, scalar_prefetch = 0 : i64, scratch_operands = 0 : i64, tpu.core_type = #tpu.core_type<tc>, window_params = [{transform_indices = @transform_0, window_bounds = array<i64: 1, 8, 32>}, {transform_indices = @transform_1, window_bounds = array<i64: 1, 8, 32>}, {transform_indices = @transform_2, window_bounds = array<i64: 1, 8, 32>}, {transform_indices = @transform_3, window_bounds = array<i64: 1, 1, 8, 8>}, {pipeline_mode = #tpu.pipeline_mode<synchronous>, transform_indices = @transform_4, window_bounds = array<i64: 32, 96>}, {pipeline_mode = #tpu.pipeline_mode<synchronous>, transform_indices = @transform_5, window_bounds = array<i64: 1, 96>}, {pipeline_mode = #tpu.pipeline_mode<synchronous>, transform_indices = @transform_6, window_bounds = array<i64: 32, 64>}, {pipeline_mode = #tpu.pipeline_mode<synchronous>, transform_indices = @transform_7, window_bounds = array<i64: 1, 64>}, {pipeline_mode = #tpu.pipeline_mode<synchronous>, transform_indices = @transform_8, window_bounds = array<i64: 32, 64>}, {pipeline_mode = #tpu.pipeline_mode<synchronous>, transform_indices = @transform_9, window_bounds = array<i64: 1, 64>}, {pipeline_mode = #tpu.pipeline_mode<synchronous>, transform_indices = @transform_10, window_bounds = array<i64: 32, 32>}, {pipeline_mode = #tpu.pipeline_mode<synchronous>, transform_indices = @transform_11, window_bounds = array<i64: 1, 32>}, {pipeline_mode = #tpu.pipeline_mode<synchronous>, transform_indices = @transform_12, window_bounds = array<i64: 1, 32>}, {pipeline_mode = #tpu.pipeline_mode<synchronous>, transform_indices = @transform_13, window_bounds = array<i64: 1, 32>}, {transform_indices = @transform_14, window_bounds = array<i64: 1, 8, 32>}]} {
    %c0 = arith.constant 0 : index
    %c0_0 = arith.constant 0 : index
    %c0_1 = arith.constant 0 : index
    %0 = vector.load %arg1[%c0, %c0_0, %c0_1] : memref<1x8x32xf32, #tpu.memory_space<vmem>>, vector<1x8x32xf32>
    %1 = vector.shape_cast %0 : vector<1x8x32xf32> to vector<8x32xf32>
    %c0_2 = arith.constant 0 : index
    %c0_3 = arith.constant 0 : index
    %2 = vector.load %arg5[%c0_2, %c0_3] : memref<32x96xf32, #tpu.memory_space<vmem>>, vector<32x96xf32>
    %cst = arith.constant dense<0.000000e+00> : vector<8x96xf32>
    %3 = tpu.matmul %1, %2, %cst {dimension_numbers = #tpu.dot_dimension_numbers<[1], [0], [0], [1], [0, 0, 1, 1], [], []>} : vector<8x32xf32>, vector<32x96xf32>, vector<8x96xf32> -> vector<8x96xf32>
    %c0_4 = arith.constant 0 : index
    %c0_5 = arith.constant 0 : index
    %4 = vector.load %arg6[%c0_4, %c0_5] : memref<1x96xf32, #tpu.memory_space<vmem>>, vector<1x96xf32>
    %5 = vector.broadcast %4 : vector<1x96xf32> to vector<8x96xf32>
    %6 = arith.addf %3, %5 : vector<8x96xf32>
    %c0_6 = arith.constant 0 : index
    %c0_7 = arith.constant 0 : index
    %c0_8 = arith.constant 0 : index
    %7 = vector.load %arg2[%c0_6, %c0_7, %c0_8] : memref<1x8x32xf32, #tpu.memory_space<vmem>>, vector<1x8x32xf32>
    %8 = vector.shape_cast %7 : vector<1x8x32xf32> to vector<8x32xf32>
    %c0_9 = arith.constant 0 : index
    %c0_10 = arith.constant 0 : index
    %9 = vector.load %arg7[%c0_9, %c0_10] : memref<32x64xf32, #tpu.memory_space<vmem>>, vector<32x64xf32>
    %cst_11 = arith.constant dense<0.000000e+00> : vector<8x64xf32>
    %10 = tpu.matmul %8, %9, %cst_11 {dimension_numbers = #tpu.dot_dimension_numbers<[1], [0], [0], [1], [0, 0, 1, 1], [], []>} : vector<8x32xf32>, vector<32x64xf32>, vector<8x64xf32> -> vector<8x64xf32>
    %c0_12 = arith.constant 0 : index
    %c0_13 = arith.constant 0 : index
    %11 = vector.load %arg8[%c0_12, %c0_13] : memref<1x64xf32, #tpu.memory_space<vmem>>, vector<1x64xf32>
    %12 = vector.broadcast %11 : vector<1x64xf32> to vector<8x64xf32>
    %13 = arith.addf %10, %12 : vector<8x64xf32>
    %c0_14 = arith.constant 0 : index
    %c0_15 = arith.constant 0 : index
    %c0_16 = arith.constant 0 : index
    %14 = vector.load %arg3[%c0_14, %c0_15, %c0_16] : memref<1x8x32xf32, #tpu.memory_space<vmem>>, vector<1x8x32xf32>
    %15 = vector.shape_cast %14 : vector<1x8x32xf32> to vector<8x32xf32>
    %c0_17 = arith.constant 0 : index
    %c0_18 = arith.constant 0 : index
    %16 = vector.load %arg9[%c0_17, %c0_18] : memref<32x64xf32, #tpu.memory_space<vmem>>, vector<32x64xf32>
    %cst_19 = arith.constant dense<0.000000e+00> : vector<8x64xf32>
    %17 = tpu.matmul %15, %16, %cst_19 {dimension_numbers = #tpu.dot_dimension_numbers<[1], [0], [0], [1], [0, 0, 1, 1], [], []>} : vector<8x32xf32>, vector<32x64xf32>, vector<8x64xf32> -> vector<8x64xf32>
    %c0_20 = arith.constant 0 : index
    %c0_21 = arith.constant 0 : index
    %18 = vector.load %arg10[%c0_20, %c0_21] : memref<1x64xf32, #tpu.memory_space<vmem>>, vector<1x64xf32>
    %19 = vector.broadcast %18 : vector<1x64xf32> to vector<8x64xf32>
    %20 = arith.addf %17, %19 : vector<8x64xf32>
    %c0_22 = arith.constant 0 : index
    %c0_23 = arith.constant 0 : index
    %c0_24 = arith.constant 0 : index
    %c0_25 = arith.constant 0 : index
    %21 = vector.load %arg4[%c0_22, %c0_23, %c0_24, %c0_25] : memref<1x1x8x8xf32, #tpu.memory_space<vmem>>, vector<1x1x8x8xf32>
    %22 = vector.shape_cast %21 : vector<1x1x8x8xf32> to vector<8x8xf32>
    %23 = vector.extract_strided_slice %6 {offsets = [0, 0], sizes = [8, 16], strides = [1, 1]} : vector<8x96xf32> to vector<8x16xf32>
    %24 = vector.extract_strided_slice %13 {offsets = [0, 0], sizes = [8, 16], strides = [1, 1]} : vector<8x64xf32> to vector<8x16xf32>
    %25 = vector.extract_strided_slice %6 {offsets = [0, 32], sizes = [8, 16], strides = [1, 1]} : vector<8x96xf32> to vector<8x16xf32>
    %26 = vector.extract_strided_slice %13 {offsets = [0, 32], sizes = [8, 16], strides = [1, 1]} : vector<8x64xf32> to vector<8x16xf32>
    %27 = vector.extract_strided_slice %20 {offsets = [0, 0], sizes = [8, 16], strides = [1, 1]} : vector<8x64xf32> to vector<8x16xf32>
    %28 = vector.extract_strided_slice %20 {offsets = [0, 32], sizes = [8, 16], strides = [1, 1]} : vector<8x64xf32> to vector<8x16xf32>
    %29 = tpu.concatenate %23, %24, %27 in 1 : vector<8x16xf32>, vector<8x16xf32>, vector<8x16xf32> -> vector<8x48xf32>
    %30 = tpu.concatenate %25, %26, %28 in 1 : vector<8x16xf32>, vector<8x16xf32>, vector<8x16xf32> -> vector<8x48xf32>
    %31 = vector.extract_strided_slice %6 {offsets = [0, 64], sizes = [8, 16], strides = [1, 1]} : vector<8x96xf32> to vector<8x16xf32>
    %cst_26 = arith.constant dense<0.000000e+00> : vector<8x8xf32>
    %32 = tpu.matmul %29, %30, %cst_26 {dimension_numbers = #tpu.dot_dimension_numbers<[1], [1], [0], [0], [0, 0, 1, 0], [], []>} : vector<8x48xf32>, vector<8x48xf32>, vector<8x8xf32> -> vector<8x8xf32>
    %cst_27 = arith.constant 2.500000e-01 : f32
    %33 = vector.broadcast %cst_27 : f32 to vector<8x8xf32>
    %34 = arith.mulf %32, %33 : vector<8x8xf32>
    %35 = arith.addf %34, %22 : vector<8x8xf32>
    %cst_28 = arith.constant dense<0xFF800000> : vector<8xf32>
    %36 = vector.multi_reduction <maximumf>, %35, %cst_28 [1] : vector<8x8xf32> to vector<8xf32>
    %37 = vector.shape_cast %36 : vector<8xf32> to vector<8x1xf32>
    %38 = vector.broadcast %37 : vector<8x1xf32> to vector<8x8xf32>
    %39 = arith.subf %35, %38 : vector<8x8xf32>
    %40 = math.exp %39 : vector<8x8xf32>
    %cst_29 = arith.constant dense<0.000000e+00> : vector<8xf32>
    %41 = vector.multi_reduction <add>, %40, %cst_29 [1] : vector<8x8xf32> to vector<8xf32>
    %42 = vector.shape_cast %41 : vector<8xf32> to vector<8x1xf32>
    %43 = tpu.reciprocal %42 {approx = true} : vector<8x1xf32> -> vector<8x1xf32>
    %44 = vector.broadcast %43 : vector<8x1xf32> to vector<8x8xf32>
    %45 = arith.mulf %40, %44 : vector<8x8xf32>
    %cst_30 = arith.constant dense<0.000000e+00> : vector<8x16xf32>
    %46 = tpu.matmul %45, %31, %cst_30 {dimension_numbers = #tpu.dot_dimension_numbers<[1], [0], [0], [1], [0, 0, 1, 1], [], []>} : vector<8x8xf32>, vector<8x16xf32>, vector<8x16xf32> -> vector<8x16xf32>
    %47 = vector.extract_strided_slice %6 {offsets = [0, 16], sizes = [8, 16], strides = [1, 1]} : vector<8x96xf32> to vector<8x16xf32>
    %48 = vector.extract_strided_slice %13 {offsets = [0, 16], sizes = [8, 16], strides = [1, 1]} : vector<8x64xf32> to vector<8x16xf32>
    %49 = vector.extract_strided_slice %6 {offsets = [0, 48], sizes = [8, 16], strides = [1, 1]} : vector<8x96xf32> to vector<8x16xf32>
    %50 = vector.extract_strided_slice %13 {offsets = [0, 48], sizes = [8, 16], strides = [1, 1]} : vector<8x64xf32> to vector<8x16xf32>
    %51 = vector.extract_strided_slice %20 {offsets = [0, 16], sizes = [8, 16], strides = [1, 1]} : vector<8x64xf32> to vector<8x16xf32>
    %52 = vector.extract_strided_slice %20 {offsets = [0, 48], sizes = [8, 16], strides = [1, 1]} : vector<8x64xf32> to vector<8x16xf32>
    %53 = tpu.concatenate %47, %48, %51 in 1 : vector<8x16xf32>, vector<8x16xf32>, vector<8x16xf32> -> vector<8x48xf32>
    %54 = tpu.concatenate %49, %50, %52 in 1 : vector<8x16xf32>, vector<8x16xf32>, vector<8x16xf32> -> vector<8x48xf32>
    %55 = vector.extract_strided_slice %6 {offsets = [0, 80], sizes = [8, 16], strides = [1, 1]} : vector<8x96xf32> to vector<8x16xf32>
    %cst_31 = arith.constant dense<0.000000e+00> : vector<8x8xf32>
    %56 = tpu.matmul %53, %54, %cst_31 {dimension_numbers = #tpu.dot_dimension_numbers<[1], [1], [0], [0], [0, 0, 1, 0], [], []>} : vector<8x48xf32>, vector<8x48xf32>, vector<8x8xf32> -> vector<8x8xf32>
    %cst_32 = arith.constant 2.500000e-01 : f32
    %57 = vector.broadcast %cst_32 : f32 to vector<8x8xf32>
    %58 = arith.mulf %56, %57 : vector<8x8xf32>
    %59 = arith.addf %58, %22 : vector<8x8xf32>
    %cst_33 = arith.constant dense<0xFF800000> : vector<8xf32>
    %60 = vector.multi_reduction <maximumf>, %59, %cst_33 [1] : vector<8x8xf32> to vector<8xf32>
    %61 = vector.shape_cast %60 : vector<8xf32> to vector<8x1xf32>
    %62 = vector.broadcast %61 : vector<8x1xf32> to vector<8x8xf32>
    %63 = arith.subf %59, %62 : vector<8x8xf32>
    %64 = math.exp %63 : vector<8x8xf32>
    %cst_34 = arith.constant dense<0.000000e+00> : vector<8xf32>
    %65 = vector.multi_reduction <add>, %64, %cst_34 [1] : vector<8x8xf32> to vector<8xf32>
    %66 = vector.shape_cast %65 : vector<8xf32> to vector<8x1xf32>
    %67 = tpu.reciprocal %66 {approx = true} : vector<8x1xf32> -> vector<8x1xf32>
    %68 = vector.broadcast %67 : vector<8x1xf32> to vector<8x8xf32>
    %69 = arith.mulf %64, %68 : vector<8x8xf32>
    %cst_35 = arith.constant dense<0.000000e+00> : vector<8x16xf32>
    %70 = tpu.matmul %69, %55, %cst_35 {dimension_numbers = #tpu.dot_dimension_numbers<[1], [0], [0], [1], [0, 0, 1, 1], [], []>} : vector<8x8xf32>, vector<8x16xf32>, vector<8x16xf32> -> vector<8x16xf32>
    %71 = tpu.concatenate %46, %70 in 1 : vector<8x16xf32>, vector<8x16xf32> -> vector<8x32xf32>
    %c0_36 = arith.constant 0 : index
    %c0_37 = arith.constant 0 : index
    %72 = vector.load %arg11[%c0_36, %c0_37] : memref<32x32xf32, #tpu.memory_space<vmem>>, vector<32x32xf32>
    %cst_38 = arith.constant dense<0.000000e+00> : vector<8x32xf32>
    %73 = tpu.matmul %71, %72, %cst_38 {dimension_numbers = #tpu.dot_dimension_numbers<[1], [0], [0], [1], [0, 0, 1, 1], [], []>} : vector<8x32xf32>, vector<32x32xf32>, vector<8x32xf32> -> vector<8x32xf32>
    %c0_39 = arith.constant 0 : index
    %c0_40 = arith.constant 0 : index
    %74 = vector.load %arg12[%c0_39, %c0_40] : memref<1x32xf32, #tpu.memory_space<vmem>>, vector<1x32xf32>
    %75 = vector.broadcast %74 : vector<1x32xf32> to vector<8x32xf32>
    %76 = arith.addf %73, %75 : vector<8x32xf32>
    %77 = arith.addf %76, %1 : vector<8x32xf32>
    %cst_41 = arith.constant dense<0.000000e+00> : vector<8xf32>
    %78 = vector.multi_reduction <add>, %77, %cst_41 [1] : vector<8x32xf32> to vector<8xf32>
    %79 = vector.shape_cast %78 : vector<8xf32> to vector<8x1xf32>
    %cst_42 = arith.constant 3.200000e+01 : f32
    %80 = vector.broadcast %cst_42 : f32 to vector<8x1xf32>
    %81 = arith.divf %79, %80 : vector<8x1xf32>
    %82 = vector.broadcast %81 : vector<8x1xf32> to vector<8x32xf32>
    %83 = arith.subf %77, %82 : vector<8x32xf32>
    %84 = arith.mulf %83, %83 : vector<8x32xf32>
    %cst_43 = arith.constant dense<0.000000e+00> : vector<8xf32>
    %85 = vector.multi_reduction <add>, %84, %cst_43 [1] : vector<8x32xf32> to vector<8xf32>
    %86 = vector.shape_cast %85 : vector<8xf32> to vector<8x1xf32>
    %cst_44 = arith.constant 3.200000e+01 : f32
    %87 = vector.broadcast %cst_44 : f32 to vector<8x1xf32>
    %88 = arith.divf %86, %87 : vector<8x1xf32>
    %89 = vector.broadcast %81 : vector<8x1xf32> to vector<8x32xf32>
    %90 = arith.subf %77, %89 : vector<8x32xf32>
    %cst_45 = arith.constant 9.99999996E-13 : f32
    %91 = vector.broadcast %cst_45 : f32 to vector<8x1xf32>
    %92 = arith.addf %88, %91 : vector<8x1xf32>
    %93 = math.rsqrt %92 : vector<8x1xf32>
    %94 = vector.broadcast %93 : vector<8x1xf32> to vector<8x32xf32>
    %95 = arith.mulf %90, %94 : vector<8x32xf32>
    %c0_46 = arith.constant 0 : index
    %c0_47 = arith.constant 0 : index
    %96 = vector.load %arg13[%c0_46, %c0_47] : memref<1x32xf32, #tpu.memory_space<vmem>>, vector<1x32xf32>
    %97 = vector.broadcast %96 : vector<1x32xf32> to vector<8x32xf32>
    %98 = arith.mulf %95, %97 : vector<8x32xf32>
    %c0_48 = arith.constant 0 : index
    %c0_49 = arith.constant 0 : index
    %99 = vector.load %arg14[%c0_48, %c0_49] : memref<1x32xf32, #tpu.memory_space<vmem>>, vector<1x32xf32>
    %100 = vector.broadcast %99 : vector<1x32xf32> to vector<8x32xf32>
    %101 = arith.addf %98, %100 : vector<8x32xf32>
    %c0_50 = arith.constant 0 : index
    %c0_51 = arith.constant 0 : index
    %c0_52 = arith.constant 0 : index
    %102 = vector.load %arg15[%c0_50, %c0_51, %c0_52] : memref<1x8x32xf32, #tpu.memory_space<vmem>>, vector<1x8x32xf32>
    %103 = vector.shape_cast %102 : vector<1x8x32xf32> to vector<8x32xf32>
    %104 = vector.shape_cast %101 : vector<8x32xf32> to vector<1x8x32xf32>
    tpu.vector_store %arg15[%c0_50, %c0_51, %c0_52], %104 {strides = array<i32>} : memref<1x8x32xf32, #tpu.memory_space<vmem>>, vector<1x8x32xf32>,
    return
  }
  func.func @transform_0(%arg0: i32) -> (i32, i32, i32) {
    %c0_i32 = arith.constant 0 : i32
    %c0_i32_0 = arith.constant 0 : i32
    %c0_i32_1 = arith.constant 0 : i32
    return %arg0, %c0_i32, %c0_i32_0 : i32, i32, i32
  }
  func.func @transform_1(%arg0: i32) -> (i32, i32, i32) {
    %c0_i32 = arith.constant 0 : i32
    %c0_i32_0 = arith.constant 0 : i32
    %c0_i32_1 = arith.constant 0 : i32
    return %arg0, %c0_i32, %c0_i32_0 : i32, i32, i32
  }
  func.func @transform_2(%arg0: i32) -> (i32, i32, i32) {
    %c0_i32 = arith.constant 0 : i32
    %c0_i32_0 = arith.constant 0 : i32
    %c0_i32_1 = arith.constant 0 : i32
    return %arg0, %c0_i32, %c0_i32_0 : i32, i32, i32
  }
  func.func @transform_3(%arg0: i32) -> (i32, i32, i32, i32) {
    %c0_i32 = arith.constant 0 : i32
    %c0_i32_0 = arith.constant 0 : i32
    %c0_i32_1 = arith.constant 0 : i32
    %c0_i32_2 = arith.constant 0 : i32
    return %arg0, %c0_i32, %c0_i32_0, %c0_i32_1 : i32, i32, i32, i32
  }
  func.func @transform_4(%arg0: i32) -> (i32, i32) {
    %c0_i32 = arith.constant 0 : i32
    %c0_i32_0 = arith.constant 0 : i32
    %c0_i32_1 = arith.constant 0 : i32
    return %c0_i32, %c0_i32_0 : i32, i32
  }
  func.func @transform_5(%arg0: i32) -> (i32, i32) {
    %c0_i32 = arith.constant 0 : i32
    %c0_i32_0 = arith.constant 0 : i32
    %c0_i32_1 = arith.constant 0 : i32
    return %c0_i32, %c0_i32_0 : i32, i32
  }
  func.func @transform_6(%arg0: i32) -> (i32, i32) {
    %c0_i32 = arith.constant 0 : i32
    %c0_i32_0 = arith.constant 0 : i32
    %c0_i32_1 = arith.constant 0 : i32
    return %c0_i32, %c0_i32_0 : i32, i32
  }
  func.func @transform_7(%arg0: i32) -> (i32, i32) {
    %c0_i32 = arith.constant 0 : i32
    %c0_i32_0 = arith.constant 0 : i32
    %c0_i32_1 = arith.constant 0 : i32
    return %c0_i32, %c0_i32_0 : i32, i32
  }
  func.func @transform_8(%arg0: i32) -> (i32, i32) {
    %c0_i32 = arith.constant 0 : i32
    %c0_i32_0 = arith.constant 0 : i32
    %c0_i32_1 = arith.constant 0 : i32
    return %c0_i32, %c0_i32_0 : i32, i32
  }
  func.func @transform_9(%arg0: i32) -> (i32, i32) {
    %c0_i32 = arith.constant 0 : i32
    %c0_i32_0 = arith.constant 0 : i32
    %c0_i32_1 = arith.constant 0 : i32
    return %c0_i32, %c0_i32_0 : i32, i32
  }
  func.func @transform_10(%arg0: i32) -> (i32, i32) {
    %c0_i32 = arith.constant 0 : i32
    %c0_i32_0 = arith.constant 0 : i32
    %c0_i32_1 = arith.constant 0 : i32
    return %c0_i32, %c0_i32_0 : i32, i32
  }
  func.func @transform_11(%arg0: i32) -> (i32, i32) {
    %c0_i32 = arith.constant 0 : i32
    %c0_i32_0 = arith.constant 0 : i32
    %c0_i32_1 = arith.constant 0 : i32
    return %c0_i32, %c0_i32_0 : i32, i32
  }
  func.func @transform_12(%arg0: i32) -> (i32, i32) {
    %c0_i32 = arith.constant 0 : i32
    %c0_i32_0 = arith.constant 0 : i32
    %c0_i32_1 = arith.constant 0 : i32
    return %c0_i32, %c0_i32_0 : i32, i32
  }
  func.func @transform_13(%arg0: i32) -> (i32, i32) {
    %c0_i32 = arith.constant 0 : i32
    %c0_i32_0 = arith.constant 0 : i32
    %c0_i32_1 = arith.constant 0 : i32
    return %c0_i32, %c0_i32_0 : i32, i32
  }
  func.func @transform_14(%arg0: i32) -> (i32, i32, i32) {
    %c0_i32 = arith.constant 0 : i32
    %c0_i32_0 = arith.constant 0 : i32
    %c0_i32_1 = arith.constant 0 : i32
    return %arg0, %c0_i32, %c0_i32_0 : i32, i32, i32
  }
}

</mosaic_0001>

<llo_original>
// kernel: dif_multi_head_attention.1
$region0: #{dif_multi_head_attention.1}
  #allocation0 [shape = 'u32[]', space=smem, size = 0x4, offset = 0x4, fixed_abs, tag = 'smem constant byte address 0x4 - core index']
  #allocation1 [shape = 'u32[144,128]{1,0:T(1,128)}', space=vmem, size = 0x12000, scoped, tag = 'internal scratch']
  %s0 = inlined_call_operand.vmem [shape: f32[2,8,32], index: 0, kind: input, shape index: {}]
  %s1 = inlined_call_operand.vmem [shape: f32[2,8,32], index: 1, kind: input, shape index: {}]
  %s2 = inlined_call_operand.hbm [shape: f32[2,8,32], index: 2, kind: input, shape index: {}]
  %s3 = inlined_call_operand.hbm [shape: f32[2,1,8,8], index: 3, kind: input, shape index: {}]
  %s4 = inlined_call_operand.hbm [shape: f32[32,96], index: 4, kind: input, shape index: {}]
  %s5 = inlined_call_operand.hbm [shape: f32[1,96], index: 5, kind: input, shape index: {}]
  %s6 = inlined_call_operand.hbm [shape: f32[32,64], index: 6, kind: input, shape index: {}]
  %s7 = inlined_call_operand.hbm [shape: f32[1,64], index: 7, kind: input, shape index: {}]
  %s8 = inlined_call_operand.hbm [shape: f32[32,64], index: 8, kind: input, shape index: {}]
  %s9 = inlined_call_operand.hbm [shape: f32[1,64], index: 9, kind: input, shape index: {}]
  %s10 = inlined_call_operand.hbm [shape: f32[32,32], index: 10, kind: input, shape index: {}]
  %s11 = inlined_call_operand.hbm [shape: f32[1,32], index: 11, kind: input, shape index: {}]
  %s12 = inlined_call_operand.hbm [shape: f32[1,32], index: 12, kind: input, shape index: {}]
  %s13 = inlined_call_operand.hbm [shape: f32[1,32], index: 13, kind: input, shape index: {}]
  %s14 = inlined_call_operand.hbm [shape: f32[2,8,32], index: 14, kind: output, shape index: {}]
  %s15 = sld [smem:[#allocation0]]
  $region137: #{dif_multi_head_attention.1} parent=0
    _
  %s17 = ssub.s32 1, %s15
  %s18 = scalar_select 0, %s17, %s15
  $region1: #{dif_multi_head_attention.1} parent=0
    #allocation2 [shape = 'u8[8192]{0}', space=vmem, size = 0x2000, scoped, tag = 'input window, operand 2']
    #allocation3 [shape = 's32[2]{0}', space=sflag, size = 0x8, scoped, tag = 'scoped memory for dif_multi_head_attention.1']
    #allocation4 [shape = 's32[2]{0}', space=sflag, size = 0x8, scoped, tag = 'scoped memory for dif_multi_head_attention.1']
    #allocation5 [shape = 'u8[8192]{0}', space=vmem, size = 0x2000, scoped, tag = 'input window, operand 3']
    #allocation6 [shape = 's32[2]{0}', space=sflag, size = 0x8, scoped, tag = 'scoped memory for dif_multi_head_attention.1']
    #allocation7 [shape = 'u8[16384]{0}', space=vmem, size = 0x4000, scoped, tag = 'input window, operand 4, single buffered']
    #allocation8 [shape = 'u8[512]{0}', space=vmem, size = 0x400, scoped, tag = 'input window, operand 5, single buffered']
    #allocation9 [shape = 's32[1]{0}', space=sflag, size = 0x4, scoped, tag = 'scoped memory for dif_multi_head_attention.1']
    #allocation10 [shape = 'u8[16384]{0}', space=vmem, size = 0x4000, scoped, tag = 'input window, operand 6, single buffered']
    #allocation11 [shape = 'u8[512]{0}', space=vmem, size = 0x400, scoped, tag = 'input window, operand 7, single buffered']
    #allocation12 [shape = 's32[1]{0}', space=sflag, size = 0x4, scoped, tag = 'scoped memory for dif_multi_head_attention.1']
    #allocation13 [shape = 'u8[16384]{0}', space=vmem, size = 0x4000, scoped, tag = 'input window, operand 8, single buffered']
    #allocation14 [shape = 'u8[512]{0}', space=vmem, size = 0x400, scoped, tag = 'input window, operand 9, single buffered']
    #allocation15 [shape = 's32[1]{0}', space=sflag, size = 0x4, scoped, tag = 'scoped memory for dif_multi_head_attention.1']
    #allocation16 [shape = 'u8[16384]{0}', space=vmem, size = 0x4000, scoped, tag = 'input window, operand 10, single buffered']
    #allocation17 [shape = 'u8[512]{0}', space=vmem, size = 0x400, scoped, tag = 'input window, operand 11, single buffered']
    #allocation18 [shape = 's32[1]{0}', space=sflag, size = 0x4, scoped, tag = 'scoped memory for dif_multi_head_attention.1']
    #allocation19 [shape = 'u8[512]{0}', space=vmem, size = 0x400, scoped, tag = 'input window, operand 12, single buffered']
    #allocation20 [shape = 'u8[512]{0}', space=vmem, size = 0x400, scoped, tag = 'input window, operand 13, single buffered']
    #allocation21 [shape = 's32[1]{0}', space=sflag, size = 0x4, scoped, tag = 'scoped memory for dif_multi_head_attention.1']
    #allocation22 [shape = 'u8[8192]{0}', space=vmem, size = 0x2000, scoped, tag = 'output window, operand 0']
    %19 = vsyncpa [#allocation3], 0
    %s20 = scalar_lea.sflag [#allocation3], 1
    %21 = vsyncpa %s20, 0
    %22 = vsyncpa [#allocation6], 0
    %s23 = scalar_lea.sflag [#allocation6], 1
    %24 = vsyncpa %s23, 0
    %25 = vsyncpa [#allocation9], 0
    %26 = vsyncpa [#allocation12], 0
    %27 = vsyncpa [#allocation15], 0
    %28 = vsyncpa [#allocation18], 0
    %29 = vsyncpa [#allocation21], 0
    %30 = vsyncpa [#allocation4], 0
    %s31 = scalar_lea.sflag [#allocation4], 1
    %32 = vsyncpa %s31, 0
    loop: start=0, step=1, limit=4
    $region2: #{dif_multi_head_attention.1} parent=1 // loop_pre_header
      _
    $region3: #{dif_multi_head_attention.1} parent=1 // loop_header
      %s34 = sphi 0, %s38
      %p35 = scmp.ge.s32.totalorder %s34, 4
      %s44 = sphi 0, %s46
      %s47 = sphi 0, %s44
      %s48 = sphi 0, %s47
      %s64 = sphi 0, %s48
      %s70 = sphi 0, %s72
      %s73 = sphi 0, %s70
      %s74 = sphi 0, %s73
      %s90 = sphi 0, %s74
      %s96 = sphi 0, %s98
      %s99 = sphi 0, %s96
      %s100 = sphi 0, %s99
      %s116 = sphi 0, %s100
      %s122 = sphi 0, %s124
      %s125 = sphi 0, %s122
      %s126 = sphi 0, %s125
      %s142 = sphi 0, %s126
      %s146 = sphi 0, %s146
      %s148 = sphi 0, %s146
      %s149 = sphi 0, %s148
      %s163 = sphi 0, %s149
      %s167 = sphi 0, %s167
      %s169 = sphi 0, %s167
      %s170 = sphi 0, %s169
      %s184 = sphi 0, %s170
      %s188 = sphi 0, %s188
      %s190 = sphi 0, %s188
      %s191 = sphi 0, %s190
      %s205 = sphi 0, %s191
      %s209 = sphi 0, %s209
      %s211 = sphi 0, %s209
      %s212 = sphi 0, %s211
      %s226 = sphi 0, %s212
      %s230 = sphi 0, %s230
      %s232 = sphi 0, %s230
      %s233 = sphi 0, %s232
      %s247 = sphi 0, %s233
      %s251 = sphi 0, %s251
      %s253 = sphi 0, %s251
      %s254 = sphi 0, %s253
      %s268 = sphi 0, %s254
      %s272 = sphi 0, %s272
      %s274 = sphi 0, %s272
      %s275 = sphi 0, %s274
      %s289 = sphi 0, %s275
      %s293 = sphi 0, %s293
      %s295 = sphi 0, %s293
      %s296 = sphi 0, %s295
      %s310 = sphi 0, %s296
      %s314 = sphi 0, %s314
      %s316 = sphi 0, %s314
      %s317 = sphi 0, %s316
      %s331 = sphi 0, %s317
      %s335 = sphi 0, %s335
      %s337 = sphi 0, %s335
      %s338 = sphi 0, %s337
      %s352 = sphi 0, %s338
      %s358 = sphi 0, %s360
      %s361 = sphi 0, %s358
      %s362 = sphi 0, %s361
      %s378 = sphi 0, %s362
    $region4: #{dif_multi_head_attention.1} parent=1 // loop_header_branch
      %37 = sbr.rel (%p35) target = $region8
    $region5: #{dif_multi_head_attention.1} parent=1 // loop_body
      %s39 = ssub.s32 %s34, 1
      %s40 = ssub.s32 %s34, 2
      %s41 = sadd.s32 %s34, 1
      %s42 = ssub.s32 %s34, %s41
      %p43 = scmp.eq.s32.totalorder %s42, 0
      %s45 = sadd.s32 %s44, 1
      %s46 = scalar_select %p43, %s44, %s45
      %p49 = pneg %p43
      %p50 = scmp.eq.s32.totalorder %s34, 1
      %p51 = por %p49, %p50
      %p52 = scmp.ne.s32.totalorder %s44, %s47
      %p53 = scmp.eq.s32.totalorder %s34, 0
      %p54 = por %p52, %p53
      %p55 = scmp.ne.s32.totalorder %s44, %s47
      %p56 = scmp.eq.s32.totalorder %s39, 1
      %p57 = por %p55, %p56
      %p58 = scmp.ne.s32.totalorder %s47, %s48
      %p59 = scmp.eq.s32.totalorder %s39, 0
      %p60 = por %p58, %p59
      %p61 = scmp.ne.s32.totalorder %s47, %s48
      %p62 = scmp.eq.s32.totalorder %s40, 1
      %p63 = por %p61, %p62
      %p65 = scmp.ne.s32.totalorder %s48, %s64
      %p66 = scmp.eq.s32.totalorder %s40, 0
      %p67 = por %p65, %p66
      %s68 = ssub.s32 %s34, %s41
      %p69 = scmp.eq.s32.totalorder %s68, 0
      %s71 = sadd.s32 %s70, 1
      %s72 = scalar_select %p69, %s70, %s71
      %p75 = pneg %p69
      %p76 = scmp.eq.s32.totalorder %s34, 1
      %p77 = por %p75, %p76
      %p78 = scmp.ne.s32.totalorder %s70, %s73
      %p79 = scmp.eq.s32.totalorder %s34, 0
      %p80 = por %p78, %p79
      %p81 = scmp.ne.s32.totalorder %s70, %s73
      %p82 = scmp.eq.s32.totalorder %s39, 1
      %p83 = por %p81, %p82
      %p84 = scmp.ne.s32.totalorder %s73, %s74
      %p85 = scmp.eq.s32.totalorder %s39, 0
      %p86 = por %p84, %p85
      %p87 = scmp.ne.s32.totalorder %s73, %s74
      %p88 = scmp.eq.s32.totalorder %s40, 1
      %p89 = por %p87, %p88
      %p91 = scmp.ne.s32.totalorder %s74, %s90
      %p92 = scmp.eq.s32.totalorder %s40, 0
      %p93 = por %p91, %p92
      %s94 = ssub.s32 %s34, %s41
      %p95 = scmp.eq.s32.totalorder %s94, 0
      %s97 = sadd.s32 %s96, 1
      %s98 = scalar_select %p95, %s96, %s97
      %p101 = pneg %p95
      %p102 = scmp.eq.s32.totalorder %s34, 1
      %p103 = por %p101, %p102
      %p104 = scmp.ne.s32.totalorder %s96, %s99
      %p105 = scmp.eq.s32.totalorder %s34, 0
      %p106 = por %p104, %p105
      %p107 = scmp.ne.s32.totalorder %s96, %s99
      %p108 = scmp.eq.s32.totalorder %s39, 1
      %p109 = por %p107, %p108
      %p110 = scmp.ne.s32.totalorder %s99, %s100
      %p111 = scmp.eq.s32.totalorder %s39, 0
      %p112 = por %p110, %p111
      %p113 = scmp.ne.s32.totalorder %s99, %s100
      %p114 = scmp.eq.s32.totalorder %s40, 1
      %p115 = por %p113, %p114
      %p117 = scmp.ne.s32.totalorder %s100, %s116
      %p118 = scmp.eq.s32.totalorder %s40, 0
      %p119 = por %p117, %p118
      %s120 = ssub.s32 %s34, %s41
      %p121 = scmp.eq.s32.totalorder %s120, 0
      %s123 = sadd.s32 %s122, 1
      %s124 = scalar_select %p121, %s122, %s123
      %p127 = pneg %p121
      %p128 = scmp.eq.s32.totalorder %s34, 1
      %p129 = por %p127, %p128
      %p130 = scmp.ne.s32.totalorder %s122, %s125
      %p131 = scmp.eq.s32.totalorder %s34, 0
      %p132 = por %p130, %p131
      %p133 = scmp.ne.s32.totalorder %s122, %s125
      %p134 = scmp.eq.s32.totalorder %s39, 1
      %p135 = por %p133, %p134
      %p136 = scmp.ne.s32.totalorder %s125, %s126
      %p137 = scmp.eq.s32.totalorder %s39, 0
      %p138 = por %p136, %p137
      %p139 = scmp.ne.s32.totalorder %s125, %s126
      %p140 = scmp.eq.s32.totalorder %s40, 1
      %p141 = por %p139, %p140
      %p143 = scmp.ne.s32.totalorder %s126, %s142
      %p144 = scmp.eq.s32.totalorder %s40, 0
      %p145 = por %p143, %p144
      %s147 = sadd.s32 %s146, 1
      %p150 = scmp.eq.s32.totalorder %s34, 1
      %p151 = scmp.ne.s32.totalorder %s146, %s148
      %p152 = scmp.eq.s32.totalorder %s34, 0
      %p153 = por %p151, %p152
      %p154 = scmp.ne.s32.totalorder %s146, %s148
      %p155 = scmp.eq.s32.totalorder %s39, 1
      %p156 = por %p154, %p155
      %p157 = scmp.ne.s32.totalorder %s148, %s149
      %p158 = scmp.eq.s32.totalorder %s39, 0
      %p159 = por %p157, %p158
      %p160 = scmp.ne.s32.totalorder %s148, %s149
      %p161 = scmp.eq.s32.totalorder %s40, 1
      %p162 = por %p160, %p161
      %p164 = scmp.ne.s32.totalorder %s149, %s163
      %p165 = scmp.eq.s32.totalorder %s40, 0
      %p166 = por %p164, %p165
      %s168 = sadd.s32 %s167, 1
      %p171 = scmp.eq.s32.totalorder %s34, 1
      %p172 = scmp.ne.s32.totalorder %s167, %s169
      %p173 = scmp.eq.s32.totalorder %s34, 0
      %p174 = por %p172, %p173
      %p175 = scmp.ne.s32.totalorder %s167, %s169
      %p176 = scmp.eq.s32.totalorder %s39, 1
      %p177 = por %p175, %p176
      %p178 = scmp.ne.s32.totalorder %s169, %s170
      %p179 = scmp.eq.s32.totalorder %s39, 0
      %p180 = por %p178, %p179
      %p181 = scmp.ne.s32.totalorder %s169, %s170
      %p182 = scmp.eq.s32.totalorder %s40, 1
      %p183 = por %p181, %p182
      %p185 = scmp.ne.s32.totalorder %s170, %s184
      %p186 = scmp.eq.s32.totalorder %s40, 0
      %p187 = por %p185, %p186
      %s189 = sadd.s32 %s188, 1
      %p192 = scmp.eq.s32.totalorder %s34, 1
      %p193 = scmp.ne.s32.totalorder %s188, %s190
      %p194 = scmp.eq.s32.totalorder %s34, 0
      %p195 = por %p193, %p194
      %p196 = scmp.ne.s32.totalorder %s188, %s190
      %p197 = scmp.eq.s32.totalorder %s39, 1
      %p198 = por %p196, %p197
      %p199 = scmp.ne.s32.totalorder %s190, %s191
      %p200 = scmp.eq.s32.totalorder %s39, 0
      %p201 = por %p199, %p200
      %p202 = scmp.ne.s32.totalorder %s190, %s191
      %p203 = scmp.eq.s32.totalorder %s40, 1
      %p204 = por %p202, %p203
      %p206 = scmp.ne.s32.totalorder %s191, %s205
      %p207 = scmp.eq.s32.totalorder %s40, 0
      %p208 = por %p206, %p207
      %s210 = sadd.s32 %s209, 1
      %p213 = scmp.eq.s32.totalorder %s34, 1
      %p214 = scmp.ne.s32.totalorder %s209, %s211
      %p215 = scmp.eq.s32.totalorder %s34, 0
      %p216 = por %p214, %p215
      %p217 = scmp.ne.s32.totalorder %s209, %s211
      %p218 = scmp.eq.s32.totalorder %s39, 1
      %p219 = por %p217, %p218
      %p220 = scmp.ne.s32.totalorder %s211, %s212
      %p221 = scmp.eq.s32.totalorder %s39, 0
      %p222 = por %p220, %p221
      %p223 = scmp.ne.s32.totalorder %s211, %s212
      %p224 = scmp.eq.s32.totalorder %s40, 1
      %p225 = por %p223, %p224
      %p227 = scmp.ne.s32.totalorder %s212, %s226
      %p228 = scmp.eq.s32.totalorder %s40, 0
      %p229 = por %p227, %p228
      %s231 = sadd.s32 %s230, 1
      %p234 = scmp.eq.s32.totalorder %s34, 1
      %p235 = scmp.ne.s32.totalorder %s230, %s232
      %p236 = scmp.eq.s32.totalorder %s34, 0
      %p237 = por %p235, %p236
      %p238 = scmp.ne.s32.totalorder %s230, %s232
      %p239 = scmp.eq.s32.totalorder %s39, 1
      %p240 = por %p238, %p239
      %p241 = scmp.ne.s32.totalorder %s232, %s233
      %p242 = scmp.eq.s32.totalorder %s39, 0
      %p243 = por %p241, %p242
      %p244 = scmp.ne.s32.totalorder %s232, %s233
      %p245 = scmp.eq.s32.totalorder %s40, 1
      %p246 = por %p244, %p245
      %p248 = scmp.ne.s32.totalorder %s233, %s247
      %p249 = scmp.eq.s32.totalorder %s40, 0
      %p250 = por %p248, %p249
      %s252 = sadd.s32 %s251, 1
      %p255 = scmp.eq.s32.totalorder %s34, 1
      %p256 = scmp.ne.s32.totalorder %s251, %s253
      %p257 = scmp.eq.s32.totalorder %s34, 0
      %p258 = por %p256, %p257
      %p259 = scmp.ne.s32.totalorder %s251, %s253
      %p260 = scmp.eq.s32.totalorder %s39, 1
      %p261 = por %p259, %p260
      %p262 = scmp.ne.s32.totalorder %s253, %s254
      %p263 = scmp.eq.s32.totalorder %s39, 0
      %p264 = por %p262, %p263
      %p265 = scmp.ne.s32.totalorder %s253, %s254
      %p266 = scmp.eq.s32.totalorder %s40, 1
      %p267 = por %p265, %p266
      %p269 = scmp.ne.s32.totalorder %s254, %s268
      %p270 = scmp.eq.s32.totalorder %s40, 0
      %p271 = por %p269, %p270
      %s273 = sadd.s32 %s272, 1
      %p276 = scmp.eq.s32.totalorder %s34, 1
      %p277 = scmp.ne.s32.totalorder %s272, %s274
      %p278 = scmp.eq.s32.totalorder %s34, 0
      %p279 = por %p277, %p278
      %p280 = scmp.ne.s32.totalorder %s272, %s274
      %p281 = scmp.eq.s32.totalorder %s39, 1
      %p282 = por %p280, %p281
      %p283 = scmp.ne.s32.totalorder %s274, %s275
      %p284 = scmp.eq.s32.totalorder %s39, 0
      %p285 = por %p283, %p284
      %p286 = scmp.ne.s32.totalorder %s274, %s275
      %p287 = scmp.eq.s32.totalorder %s40, 1
      %p288 = por %p286, %p287
      %p290 = scmp.ne.s32.totalorder %s275, %s289
      %p291 = scmp.eq.s32.totalorder %s40, 0
      %p292 = por %p290, %p291
      %s294 = sadd.s32 %s293, 1
      %p297 = scmp.eq.s32.totalorder %s34, 1
      %p298 = scmp.ne.s32.totalorder %s293, %s295
      %p299 = scmp.eq.s32.totalorder %s34, 0
      %p300 = por %p298, %p299
      %p301 = scmp.ne.s32.totalorder %s293, %s295
      %p302 = scmp.eq.s32.totalorder %s39, 1
      %p303 = por %p301, %p302
      %p304 = scmp.ne.s32.totalorder %s295, %s296
      %p305 = scmp.eq.s32.totalorder %s39, 0
      %p306 = por %p304, %p305
      %p307 = scmp.ne.s32.totalorder %s295, %s296
      %p308 = scmp.eq.s32.totalorder %s40, 1
      %p309 = por %p307, %p308
      %p311 = scmp.ne.s32.totalorder %s296, %s310
      %p312 = scmp.eq.s32.totalorder %s40, 0
      %p313 = por %p311, %p312
      %s315 = sadd.s32 %s314, 1
      %p318 = scmp.eq.s32.totalorder %s34, 1
      %p319 = scmp.ne.s32.totalorder %s314, %s316
      %p320 = scmp.eq.s32.totalorder %s34, 0
      %p321 = por %p319, %p320
      %p322 = scmp.ne.s32.totalorder %s314, %s316
      %p323 = scmp.eq.s32.totalorder %s39, 1
      %p324 = por %p322, %p323
      %p325 = scmp.ne.s32.totalorder %s316, %s317
      %p326 = scmp.eq.s32.totalorder %s39, 0
      %p327 = por %p325, %p326
      %p328 = scmp.ne.s32.totalorder %s316, %s317
      %p329 = scmp.eq.s32.totalorder %s40, 1
      %p330 = por %p328, %p329
      %p332 = scmp.ne.s32.totalorder %s317, %s331
      %p333 = scmp.eq.s32.totalorder %s40, 0
      %p334 = por %p332, %p333
      %s336 = sadd.s32 %s335, 1
      %p339 = scmp.eq.s32.totalorder %s34, 1
      %p340 = scmp.ne.s32.totalorder %s335, %s337
      %p341 = scmp.eq.s32.totalorder %s34, 0
      %p342 = por %p340, %p341
      %p343 = scmp.ne.s32.totalorder %s335, %s337
      %p344 = scmp.eq.s32.totalorder %s39, 1
      %p345 = por %p343, %p344
      %p346 = scmp.ne.s32.totalorder %s337, %s338
      %p347 = scmp.eq.s32.totalorder %s39, 0
      %p348 = por %p346, %p347
      %p349 = scmp.ne.s32.totalorder %s337, %s338
      %p350 = scmp.eq.s32.totalorder %s40, 1
      %p351 = por %p349, %p350
      %p353 = scmp.ne.s32.totalorder %s338, %s352
      %p354 = scmp.eq.s32.totalorder %s40, 0
      %p355 = por %p353, %p354
      %s356 = ssub.s32 %s34, %s41
      %p357 = scmp.eq.s32.totalorder %s356, 0
      %s359 = sadd.s32 %s358, 1
      %s360 = scalar_select %p357, %s358, %s359
      %p363 = pneg %p357
      %p364 = scmp.eq.s32.totalorder %s34, 1
      %p365 = por %p363, %p364
      %p366 = scmp.ne.s32.totalorder %s358, %s361
      %p367 = scmp.eq.s32.totalorder %s34, 0
      %p368 = por %p366, %p367
      %p369 = scmp.ne.s32.totalorder %s358, %s361
      %p370 = scmp.eq.s32.totalorder %s39, 1
      %p371 = por %p369, %p370
      %p372 = scmp.ne.s32.totalorder %s361, %s362
      %p373 = scmp.eq.s32.totalorder %s39, 0
      %p374 = por %p372, %p373
      %p375 = scmp.ne.s32.totalorder %s361, %s362
      %p376 = scmp.eq.s32.totalorder %s40, 1
      %p377 = por %p375, %p376
      %p379 = scmp.ne.s32.totalorder %s362, %s378
      %p380 = scmp.eq.s32.totalorder %s40, 0
      %p381 = por %p379, %p380
      %p382 = scmp.le.s32.totalorder 1, %s34
      %p383 = scmp.lt.s32.totalorder %s34, 3
      %p384 = pnand %p382, %p383
      %p385 = pneg %p384
      // Predicated region
      $region9: #{dif_multi_head_attention.1} parent=5 // pred_check
        _
      $region10: #{dif_multi_head_attention.1} parent=5 // pred_check_branch
        %387 = sbr.rel (%p384) target = $region12
      $region11: #{dif_multi_head_attention.1} parent=5 // pred_region
        %s388 = ssub.s32 %s34, 1
        // Predicated region
        $region13: #{dif_multi_head_attention.1} parent=11 // pred_check
          %p389 = pneg %p159
        $region14: #{dif_multi_head_attention.1} parent=11 // pred_check_branch
          %391 = sbr.rel (%p389) target = $region16
        $region15: #{dif_multi_head_attention.1} parent=11 // pred_region
          %s393 = ssub.s32 512, 512
          %394 = vsyncadd [#allocation6], %s393
          %s395 = sshll.u32 [#allocation7], 4
          %s396 = int_to_ptr.vmem [resolvable:$true] %s395
          %401 = dma.hbm_to_vmem [thread:$0]  %s4, 512, %s396, [#allocation6], 128, 128, 8
        $region16: #{dif_multi_head_attention.1} parent=11 // pred_fallthru
          _
        // Predicated region
        $region17: #{dif_multi_head_attention.1} parent=11 // pred_check
          %p402 = pneg %p180
        $region18: #{dif_multi_head_attention.1} parent=11 // pred_check_branch
          %404 = sbr.rel (%p402) target = $region20
        $region19: #{dif_multi_head_attention.1} parent=11 // pred_region
          %s406 = ssub.s32 16, 16
          %407 = vsyncadd [#allocation9], %s406
          %s409 = sshll.u32 [#allocation8], 4
          %s410 = int_to_ptr.vmem [resolvable:$true] %s409
          %412 = dma.hbm_to_vmem [thread:$0]  %s5, 16, %s410, [#allocation9]
        $region20: #{dif_multi_head_attention.1} parent=11 // pred_fallthru
          _
        // Predicated region
        $region21: #{dif_multi_head_attention.1} parent=11 // pred_check
          %p413 = pneg %p201
        $region22: #{dif_multi_head_attention.1} parent=11 // pred_check_branch
          %415 = sbr.rel (%p413) target = $region24
        $region23: #{dif_multi_head_attention.1} parent=11 // pred_region
          %s417 = ssub.s32 512, 512
          %418 = vsyncadd [#allocation9], %s417
          %s419 = sshll.u32 [#allocation10], 4
          %s420 = int_to_ptr.vmem [resolvable:$true] %s419
          %425 = dma.hbm_to_vmem [thread:$0]  %s6, 512, %s420, [#allocation9], 128, 128, 8
        $region24: #{dif_multi_head_attention.1} parent=11 // pred_fallthru
          _
        // Predicated region
        $region25: #{dif_multi_head_attention.1} parent=11 // pred_check
          %p426 = pneg %p222
        $region26: #{dif_multi_head_attention.1} parent=11 // pred_check_branch
          %428 = sbr.rel (%p426) target = $region28
        $region27: #{dif_multi_head_attention.1} parent=11 // pred_region
          %s430 = ssub.s32 16, 16
          %431 = vsyncadd [#allocation12], %s430
          %s433 = sshll.u32 [#allocation11], 4
          %s434 = int_to_ptr.vmem [resolvable:$true] %s433
          %436 = dma.hbm_to_vmem [thread:$0]  %s7, 16, %s434, [#allocation12]
        $region28: #{dif_multi_head_attention.1} parent=11 // pred_fallthru
          _
        // Predicated region
        $region29: #{dif_multi_head_attention.1} parent=11 // pred_check
          %p437 = pneg %p243
        $region30: #{dif_multi_head_attention.1} parent=11 // pred_check_branch
          %439 = sbr.rel (%p437) target = $region32
        $region31: #{dif_multi_head_attention.1} parent=11 // pred_region
          %s441 = ssub.s32 512, 512
          %442 = vsyncadd [#allocation12], %s441
          %s443 = sshll.u32 [#allocation13], 4
          %s444 = int_to_ptr.vmem [resolvable:$true] %s443
          %449 = dma.hbm_to_vmem [thread:$0]  %s8, 512, %s444, [#allocation12], 128, 128, 8
        $region32: #{dif_multi_head_attention.1} parent=11 // pred_fallthru
          _
        // Predicated region
        $region33: #{dif_multi_head_attention.1} parent=11 // pred_check
          %p450 = pneg %p264
        $region34: #{dif_multi_head_attention.1} parent=11 // pred_check_branch
          %452 = sbr.rel (%p450) target = $region36
        $region35: #{dif_multi_head_attention.1} parent=11 // pred_region
          %s454 = ssub.s32 16, 16
          %455 = vsyncadd [#allocation15], %s454
          %s457 = sshll.u32 [#allocation14], 4
          %s458 = int_to_ptr.vmem [resolvable:$true] %s457
          %460 = dma.hbm_to_vmem [thread:$0]  %s9, 16, %s458, [#allocation15]
        $region36: #{dif_multi_head_attention.1} parent=11 // pred_fallthru
          _
        // Predicated region
        $region37: #{dif_multi_head_attention.1} parent=11 // pred_check
          %p461 = pneg %p285
        $region38: #{dif_multi_head_attention.1} parent=11 // pred_check_branch
          %463 = sbr.rel (%p461) target = $region40
        $region39: #{dif_multi_head_attention.1} parent=11 // pred_region
          %s465 = ssub.s32 512, 512
          %466 = vsyncadd [#allocation15], %s465
          %s467 = sshll.u32 [#allocation16], 4
          %s468 = int_to_ptr.vmem [resolvable:$true] %s467
          %473 = dma.hbm_to_vmem [thread:$0]  %s10, 512, %s468, [#allocation15], 128, 128, 8
        $region40: #{dif_multi_head_attention.1} parent=11 // pred_fallthru
          _
        // Predicated region
        $region41: #{dif_multi_head_attention.1} parent=11 // pred_check
          %p474 = pneg %p306
        $region42: #{dif_multi_head_attention.1} parent=11 // pred_check_branch
          %476 = sbr.rel (%p474) target = $region44
        $region43: #{dif_multi_head_attention.1} parent=11 // pred_region
          %s478 = ssub.s32 16, 16
          %479 = vsyncadd [#allocation18], %s478
          %s481 = sshll.u32 [#allocation17], 4
          %s482 = int_to_ptr.vmem [resolvable:$true] %s481
          %484 = dma.hbm_to_vmem [thread:$0]  %s11, 16, %s482, [#allocation18]
        $region44: #{dif_multi_head_attention.1} parent=11 // pred_fallthru
          _
        // Predicated region
        $region45: #{dif_multi_head_attention.1} parent=11 // pred_check
          %p485 = pneg %p327
        $region46: #{dif_multi_head_attention.1} parent=11 // pred_check_branch
          %487 = sbr.rel (%p485) target = $region48
        $region47: #{dif_multi_head_attention.1} parent=11 // pred_region
          %s489 = ssub.s32 16, 16
          %490 = vsyncadd [#allocation18], %s489
          %s492 = sshll.u32 [#allocation19], 4
          %s493 = int_to_ptr.vmem [resolvable:$true] %s492
          %495 = dma.hbm_to_vmem [thread:$0]  %s12, 16, %s493, [#allocation18]
        $region48: #{dif_multi_head_attention.1} parent=11 // pred_fallthru
          _
        // Predicated region
        $region49: #{dif_multi_head_attention.1} parent=11 // pred_check
          %p496 = pneg %p348
        $region50: #{dif_multi_head_attention.1} parent=11 // pred_check_branch
          %498 = sbr.rel (%p496) target = $region52
        $region51: #{dif_multi_head_attention.1} parent=11 // pred_region
          %s500 = ssub.s32 16, 16
          %501 = vsyncadd [#allocation21], %s500
          %s503 = sshll.u32 [#allocation20], 4
          %s504 = int_to_ptr.vmem [resolvable:$true] %s503
          %506 = dma.hbm_to_vmem [thread:$0]  %s13, 16, %s504, [#allocation21]
        $region52: #{dif_multi_head_attention.1} parent=11 // pred_fallthru
          _
      $region12: #{dif_multi_head_attention.1} parent=5 // pred_fallthru
        _
      %p507 = scmp.lt.s32.totalorder %s34, 2
      // Predicated region
      $region53: #{dif_multi_head_attention.1} parent=5 // pred_check
        %p508 = pneg %p507
      $region54: #{dif_multi_head_attention.1} parent=5 // pred_check_branch
        %510 = sbr.rel (%p508) target = $region56
      $region55: #{dif_multi_head_attention.1} parent=5 // pred_region
        // Predicated region
        $region57: #{dif_multi_head_attention.1} parent=55 // pred_check
          %p511 = pneg %p54
        $region58: #{dif_multi_head_attention.1} parent=55 // pred_check_branch
          %513 = sbr.rel (%p511) target = $region60
        $region59: #{dif_multi_head_attention.1} parent=55 // pred_region
          %p514 = scmp.lt.s32.totalorder %s34, 1
          %s515 = scalar_select %p514, %s34, 1
          %s516 = smul.addr %s515, 8
          %s517 = scalar_lea.vmem %s0, %s516
        $region60: #{dif_multi_head_attention.1} parent=55 // pred_fallthru
          _
        // Predicated region
        $region61: #{dif_multi_head_attention.1} parent=55 // pred_check
          %p518 = pneg %p80
        $region62: #{dif_multi_head_attention.1} parent=55 // pred_check_branch
          %520 = sbr.rel (%p518) target = $region64
        $region63: #{dif_multi_head_attention.1} parent=55 // pred_region
          %p521 = scmp.lt.s32.totalorder %s34, 1
          %s522 = scalar_select %p521, %s34, 1
          %s523 = smul.addr %s522, 8
          %s524 = scalar_lea.vmem %s1, %s523
        $region64: #{dif_multi_head_attention.1} parent=55 // pred_fallthru
          _
        // Predicated region
        $region65: #{dif_multi_head_attention.1} parent=55 // pred_check
          %p525 = pneg %p106
        $region66: #{dif_multi_head_attention.1} parent=55 // pred_check_branch
          %527 = sbr.rel (%p525) target = $region68
        $region67: #{dif_multi_head_attention.1} parent=55 // pred_region
          %s528 = sand.u32 %s96, 1
          %s529 = scalar_lea.sflag [#allocation3], %s528
          %s530 = sand.u32 %s96, 1
          %s531 = smul.addr %s530, 8
          %s532 = scalar_lea.vmem [#allocation2], %s531
          %s534 = ssub.s32 128, 128
          %535 = vsyncadd %s529, %s534
          %s536 = smul.addr %s34, 128
          %s537 = scalar_lea.hbm %s2, %s536
          %s539 = sshll.u32 %s532, 4
          %s540 = int_to_ptr.vmem [resolvable:$true] %s539
          %542 = dma.hbm_to_vmem [thread:$0]  %s537, 128, %s540, %s529
        $region68: #{dif_multi_head_attention.1} parent=55 // pred_fallthru
          _
        // Predicated region
        $region69: #{dif_multi_head_attention.1} parent=55 // pred_check
          %p543 = pneg %p132
        $region70: #{dif_multi_head_attention.1} parent=55 // pred_check_branch
          %545 = sbr.rel (%p543) target = $region72
        $region71: #{dif_multi_head_attention.1} parent=55 // pred_region
          %s546 = sand.u32 %s34, 1
          %s547 = scalar_lea.sflag [#allocation6], %s546
          %s548 = sand.u32 %s122, 1
          %s549 = smul.addr %s548, 8
          %s550 = scalar_lea.vmem [#allocation5], %s549
          %s552 = ssub.s32 128, 128
          %553 = vsyncadd %s547, %s552
          %s554 = smul.addr %s34, 128
          %s555 = scalar_lea.hbm %s3, %s554
          %s557 = sshll.u32 %s550, 4
          %s558 = int_to_ptr.vmem [resolvable:$true] %s557
          %560 = dma.hbm_to_vmem [thread:$0]  %s555, 128, %s558, %s547
        $region72: #{dif_multi_head_attention.1} parent=55 // pred_fallthru
          _
      $region56: #{dif_multi_head_attention.1} parent=5 // pred_fallthru
        _
      %p561 = scmp.le.s32.totalorder 1, %s34
      %p562 = scmp.lt.s32.totalorder %s34, 3
      %p563 = pnand %p561, %p562
      %p564 = pneg %p563
      // Predicated region
      $region73: #{dif_multi_head_attention.1} parent=5 // pred_check
        _
      $region74: #{dif_multi_head_attention.1} parent=5 // pred_check_branch
        %566 = sbr.rel (%p563) target = $region76
      $region75: #{dif_multi_head_attention.1} parent=5 // pred_region
        %s567 = ssub.s32 %s34, 1
        %s568 = sand.u32 %s99, 1
        %s569 = scalar_lea.sflag [#allocation3], %s568
        %s570 = sand.u32 %s99, 1
        %s571 = smul.addr %s570, 8
        %s572 = scalar_lea.vmem [#allocation2], %s571
        // Predicated region
        $region77: #{dif_multi_head_attention.1} parent=75 // pred_check
          %p573 = pneg %p112
        $region78: #{dif_multi_head_attention.1} parent=75 // pred_check_branch
          %575 = sbr.rel (%p573) target = $region80
        $region79: #{dif_multi_head_attention.1} parent=75 // pred_region
          %576 = dma.done %s569, 128
        $region80: #{dif_multi_head_attention.1} parent=75 // pred_fallthru
          _
        %s577 = sand.u32 %s39, 1
        %s578 = scalar_lea.sflag [#allocation6], %s577
        %s579 = sand.u32 %s125, 1
        %s580 = smul.addr %s579, 8
        %s581 = scalar_lea.vmem [#allocation5], %s580
        // Predicated region
        $region81: #{dif_multi_head_attention.1} parent=75 // pred_check
          %p582 = pneg %p138
        $region82: #{dif_multi_head_attention.1} parent=75 // pred_check_branch
          %584 = sbr.rel (%p582) target = $region84
        $region83: #{dif_multi_head_attention.1} parent=75 // pred_region
          %585 = dma.done %s578, 128
        $region84: #{dif_multi_head_attention.1} parent=75 // pred_fallthru
          _
        // Predicated region
        $region85: #{dif_multi_head_attention.1} parent=75 // pred_check
          %p586 = pneg %p159
        $region86: #{dif_multi_head_attention.1} parent=75 // pred_check_branch
          %588 = sbr.rel (%p586) target = $region88
        $region87: #{dif_multi_head_attention.1} parent=75 // pred_region
          %589 = dma.done [#allocation6], 512
        $region88: #{dif_multi_head_attention.1} parent=75 // pred_fallthru
          _
        // Predicated region
        $region89: #{dif_multi_head_attention.1} parent=75 // pred_check
          %p590 = pneg %p180
        $region90: #{dif_multi_head_attention.1} parent=75 // pred_check_branch
          %592 = sbr.rel (%p590) target = $region92
        $region91: #{dif_multi_head_attention.1} parent=75 // pred_region
          %593 = dma.done [#allocation9], 16
        $region92: #{dif_multi_head_attention.1} parent=75 // pred_fallthru
          _
        // Predicated region
        $region93: #{dif_multi_head_attention.1} parent=75 // pred_check
          %p594 = pneg %p201
        $region94: #{dif_multi_head_attention.1} parent=75 // pred_check_branch
          %596 = sbr.rel (%p594) target = $region96
        $region95: #{dif_multi_head_attention.1} parent=75 // pred_region
          %597 = dma.done [#allocation9], 512
        $region96: #{dif_multi_head_attention.1} parent=75 // pred_fallthru
          _
        // Predicated region
        $region97: #{dif_multi_head_attention.1} parent=75 // pred_check
          %p598 = pneg %p222
        $region98: #{dif_multi_head_attention.1} parent=75 // pred_check_branch
          %600 = sbr.rel (%p598) target = $region100
        $region99: #{dif_multi_head_attention.1} parent=75 // pred_region
          %601 = dma.done [#allocation12], 16
        $region100: #{dif_multi_head_attention.1} parent=75 // pred_fallthru
          _
        // Predicated region
        $region101: #{dif_multi_head_attention.1} parent=75 // pred_check
          %p602 = pneg %p243
        $region102: #{dif_multi_head_attention.1} parent=75 // pred_check_branch
          %604 = sbr.rel (%p602) target = $region104
        $region103: #{dif_multi_head_attention.1} parent=75 // pred_region
          %605 = dma.done [#allocation12], 512
        $region104: #{dif_multi_head_attention.1} parent=75 // pred_fallthru
          _
        // Predicated region
        $region105: #{dif_multi_head_attention.1} parent=75 // pred_check
          %p606 = pneg %p264
        $region106: #{dif_multi_head_attention.1} parent=75 // pred_check_branch
          %608 = sbr.rel (%p606) target = $region108
        $region107: #{dif_multi_head_attention.1} parent=75 // pred_region
          %609 = dma.done [#allocation15], 16
        $region108: #{dif_multi_head_attention.1} parent=75 // pred_fallthru
          _
        // Predicated region
        $region109: #{dif_multi_head_attention.1} parent=75 // pred_check
          %p610 = pneg %p285
        $region110: #{dif_multi_head_attention.1} parent=75 // pred_check_branch
          %612 = sbr.rel (%p610) target = $region112
        $region111: #{dif_multi_head_attention.1} parent=75 // pred_region
          %613 = dma.done [#allocation15], 512
        $region112: #{dif_multi_head_attention.1} parent=75 // pred_fallthru
          _
        // Predicated region
        $region113: #{dif_multi_head_attention.1} parent=75 // pred_check
          %p614 = pneg %p306
        $region114: #{dif_multi_head_attention.1} parent=75 // pred_check_branch
          %616 = sbr.rel (%p614) target = $region116
        $region115: #{dif_multi_head_attention.1} parent=75 // pred_region
          %617 = dma.done [#allocation18], 16
        $region116: #{dif_multi_head_attention.1} parent=75 // pred_fallthru
          _
        // Predicated region
        $region117: #{dif_multi_head_attention.1} parent=75 // pred_check
          %p618 = pneg %p327
        $region118: #{dif_multi_head_attention.1} parent=75 // pred_check_branch
          %620 = sbr.rel (%p618) target = $region120
        $region119: #{dif_multi_head_attention.1} parent=75 // pred_region
          %621 = dma.done [#allocation18], 16
        $region120: #{dif_multi_head_attention.1} parent=75 // pred_fallthru
          _
        // Predicated region
        $region121: #{dif_multi_head_attention.1} parent=75 // pred_check
          %p622 = pneg %p348
        $region122: #{dif_multi_head_attention.1} parent=75 // pred_check_branch
          %624 = sbr.rel (%p622) target = $region124
        $region123: #{dif_multi_head_attention.1} parent=75 // pred_region
          %625 = dma.done [#allocation21], 16
        $region124: #{dif_multi_head_attention.1} parent=75 // pred_fallthru
          _
        %p626 = scmp.lt.s32.totalorder %s39, 1
        %s627 = scalar_select %p626, %s39, 1
        %s628 = smul.addr %s627, 8
        %s629 = scalar_lea.vmem %s0, %s628
        %p630 = pneg %p60
        %p631 = pneg %p57
        %p632 = scmp.lt.s32.totalorder %s39, 1
        %s633 = scalar_select %p632, %s39, 1
        %s634 = smul.addr %s633, 8
        %s635 = scalar_lea.vmem %s1, %s634
        %p636 = pneg %p86
        %p637 = pneg %p83
        %s638 = sand.u32 %s99, 1
        %s639 = scalar_lea.sflag [#allocation3], %s638
        %s640 = sand.u32 %s99, 1
        %s641 = smul.addr %s640, 8
        %s642 = scalar_lea.vmem [#allocation2], %s641
        %p643 = pneg %p112
        %p644 = pneg %p109
        %s645 = sand.u32 %s39, 1
        %s646 = scalar_lea.sflag [#allocation6], %s645
        %s647 = sand.u32 %s125, 1
        %s648 = smul.addr %s647, 8
        %s649 = scalar_lea.vmem [#allocation5], %s648
        %p650 = pneg %p138
        %p651 = pneg %p135
        %p652 = pneg %p159
        %p653 = pneg %p156
        %p654 = pneg %p180
        %p655 = pneg %p177
        %p656 = pneg %p201
        %p657 = pneg %p198
        %p658 = pneg %p222
        %p659 = pneg %p219
        %p660 = pneg %p243
        %p661 = pneg %p240
        %p662 = pneg %p264
        %p663 = pneg %p261
        %p664 = pneg %p285
        %p665 = pneg %p282
        %p666 = pneg %p306
        %p667 = pneg %p303
        %p668 = pneg %p327
        %p669 = pneg %p324
        %p670 = pneg %p348
        %p671 = pneg %p345
        %p672 = pneg %p374
        %p673 = pneg %p371
        %s674 = sand.u32 %s361, 1
        %s675 = scalar_lea.sflag [#allocation4], %s674
        %s676 = sand.u32 %s361, 1
        %s677 = smul.addr %s676, 8
        %s678 = scalar_lea.vmem [#allocation22], %s677
        %p679 = scmp.lt.s32.totalorder %s39, 1
        %s680 = scalar_select %p679, %s39, 1
        %s681 = smul.addr %s680, 8
        %s682 = scalar_lea.vmem %s0, %s681
        %p683 = scmp.lt.s32.totalorder %s39, 1
        %s684 = scalar_select %p683, %s39, 1
        %s685 = smul.addr %s684, 8
        %s686 = scalar_lea.vmem %s1, %s685
        %v687 = vld [vmem:[%s682] sm:$0xff]
        %v688 = vld [vmem:[#allocation7] sm:$0xff]
        %v689 = vld [vmem:[#allocation7 + $0x8] sm:$0xff]
        %v690 = vld [vmem:[#allocation7 + $0x10] sm:$0xff]
        %v691 = vld [vmem:[#allocation7 + $0x18] sm:$0xff]
        %v692 = vld [vmem:[#allocation8] sm:$0x1]
        %v694 = vlaneseq
        %v695 = vshrl.u32 %v694, 7
        %v696 = vsub.s32 0, %v695
        %v697 = vrot.slane %v692, %v696
        %vm699 = vcmask 261120
        %v701 = vsel %vm699, %v687, 0
        %703 = vmatprep.subr.mxu0 0.0
        %704 = vmatpush1.msra.mxu0 0.0
        %705 = vmatprep.subr.mxu0 0.0
        %706 = vmatpush1.msra.mxu0 0.0
        %707 = vmatprep.subr.mxu0 0.0
        %708 = vmatpush1.msra.mxu0 0.0
        %709 = vmatprep.subr.mxu0 0.0
        %710 = vmatpush1.msra.mxu0 0.0
        %711 = vmatprep.subr.mxu0 0.0
        %712 = vmatpush1.msra.mxu0 0.0
        %713 = vmatprep.subr.mxu0 0.0
        %714 = vmatpush1.msra.mxu0 0.0
        %715 = vmatprep.subr.mxu0 0.0
        %716 = vmatpush1.msra.mxu0 0.0
        %717 = vmatprep.subr.mxu0 0.0
        %718 = vmatpush1.msra.mxu0 0.0
        %719 = vmatprep.subr.mxu0 0.0
        %720 = vmatpush1.msra.mxu0 0.0
        %721 = vmatprep.subr.mxu0 0.0
        %722 = vmatpush1.msra.mxu0 0.0
        %723 = vmatprep.subr.mxu0 0.0
        %724 = vmatpush1.msra.mxu0 0.0
        %725 = vmatprep.subr.mxu0 0.0
        %726 = vmatpush1.msra.mxu0 0.0
        %727 = vmatprep.subr.mxu0 0.0
        %728 = vmatpush1.msra.mxu0 %v691
        %729 = vmatprep.subr.mxu0 0.0
        %730 = vmatpush1.msra.mxu0 %v690
        %731 = vmatprep.subr.mxu0 0.0
        %732 = vmatpush1.msra.mxu0 %v689
        %733 = vmatprep.subr.mxu0 0.0
        %734 = vmatpush1.msra.mxu0 %v688
        %735 = vmatprep.subr.mxu0 0.0
        %736 = vmatpush2.msra.mxu0 0.0
        %737 = vmatprep.subr.mxu0 0.0
        %738 = vmatpush2.msra.mxu0 0.0
        %739 = vmatprep.subr.mxu0 0.0
        %740 = vmatpush2.msra.mxu0 0.0
        %741 = vmatprep.subr.mxu0 0.0
        %742 = vmatpush2.msra.mxu0 0.0
        %743 = vmatprep.subr.mxu0 0.0
        %744 = vmatpush2.msra.mxu0 0.0
        %745 = vmatprep.subr.mxu0 0.0
        %746 = vmatpush2.msra.mxu0 0.0
        %747 = vmatprep.subr.mxu0 0.0
        %748 = vmatpush2.msra.mxu0 0.0
        %749 = vmatprep.subr.mxu0 0.0
        %750 = vmatpush2.msra.mxu0 0.0
        %751 = vmatprep.subr.mxu0 0.0
        %752 = vmatpush2.msra.mxu0 0.0
        %753 = vmatprep.subr.mxu0 0.0
        %754 = vmatpush2.msra.mxu0 0.0
        %755 = vmatprep.subr.mxu0 0.0
        %756 = vmatpush2.msra.mxu0 0.0
        %757 = vmatprep.subr.mxu0 0.0
        %758 = vmatpush2.msra.mxu0 0.0
        %759 = vmatprep.subr.mxu0 0.0
        %760 = vmatpush2.msra.mxu0 0.0
        %761 = vmatprep.subr.mxu0 0.0
        %762 = vmatpush2.msra.mxu0 0.0
        %763 = vmatprep.subr.mxu0 0.0
        %764 = vmatpush2.msra.mxu0 0.0
        %765 = vmatprep.subr.mxu0 0.0
        %766 = vmatpush2.msra.mxu0 0.0
        %767 = vmatprep.mubr.f32.mxu0 0.0
        %768 = vmatmul.mubr.f32.gmra.mxu0 %v701
        %v769 = vpop.f32.mrf.mxu0
        %v770 = vadd.f32 %v697, %v769
        %v771 = vpop.f32.mrf.mxu0
        %772 = vdwg.mxu0
        %v773 = vld [vmem:[%s686] sm:$0xff]
        %v774 = vld [vmem:[#allocation10] sm:$0xff]
        %v775 = vld [vmem:[#allocation10 + $0x8] sm:$0xff]
        %v776 = vld [vmem:[#allocation10 + $0x10] sm:$0xff]
        %v777 = vld [vmem:[#allocation10 + $0x18] sm:$0xff]
        %v778 = vld [vmem:[#allocation11] sm:$0x1]
        %v780 = vlaneseq
        %v781 = vshrl.u32 %v780, 7
        %v782 = vsub.s32 0, %v781
        %v783 = vrot.slane %v778, %v782
        %v786 = vsel %vm699, %v773, 0
        %788 = vmatprep.subr.mxu0 0.0
        %789 = vmatpush1.msra.mxu0 0.0
        %790 = vmatprep.subr.mxu0 0.0
        %791 = vmatpush1.msra.mxu0 0.0
        %792 = vmatprep.subr.mxu0 0.0
        %793 = vmatpush1.msra.mxu0 0.0
        %794 = vmatprep.subr.mxu0 0.0
        %795 = vmatpush1.msra.mxu0 0.0
        %796 = vmatprep.subr.mxu0 0.0
        %797 = vmatpush1.msra.mxu0 0.0
        %798 = vmatprep.subr.mxu0 0.0
        %799 = vmatpush1.msra.mxu0 0.0
        %800 = vmatprep.subr.mxu0 0.0
        %801 = vmatpush1.msra.mxu0 0.0
        %802 = vmatprep.subr.mxu0 0.0
        %803 = vmatpush1.msra.mxu0 0.0
        %804 = vmatprep.subr.mxu0 0.0
        %805 = vmatpush1.msra.mxu0 0.0
        %806 = vmatprep.subr.mxu0 0.0
        %807 = vmatpush1.msra.mxu0 0.0
        %808 = vmatprep.subr.mxu0 0.0
        %809 = vmatpush1.msra.mxu0 0.0
        %810 = vmatprep.subr.mxu0 0.0
        %811 = vmatpush1.msra.mxu0 0.0
        %812 = vmatprep.subr.mxu0 0.0
        %813 = vmatpush1.msra.mxu0 %v777
        %814 = vmatprep.subr.mxu0 0.0
        %815 = vmatpush1.msra.mxu0 %v776
        %816 = vmatprep.subr.mxu0 0.0
        %817 = vmatpush1.msra.mxu0 %v775
        %818 = vmatprep.subr.mxu0 0.0
        %819 = vmatpush1.msra.mxu0 %v774
        %820 = vmatprep.subr.mxu0 0.0
        %821 = vmatpush2.msra.mxu0 0.0
        %822 = vmatprep.subr.mxu0 0.0
        %823 = vmatpush2.msra.mxu0 0.0
        %824 = vmatprep.subr.mxu0 0.0
        %825 = vmatpush2.msra.mxu0 0.0
        %826 = vmatprep.subr.mxu0 0.0
        %827 = vmatpush2.msra.mxu0 0.0
        %828 = vmatprep.subr.mxu0 0.0
        %829 = vmatpush2.msra.mxu0 0.0
        %830 = vmatprep.subr.mxu0 0.0
        %831 = vmatpush2.msra.mxu0 0.0
        %832 = vmatprep.subr.mxu0 0.0
        %833 = vmatpush2.msra.mxu0 0.0
        %834 = vmatprep.subr.mxu0 0.0
        %835 = vmatpush2.msra.mxu0 0.0
        %836 = vmatprep.subr.mxu0 0.0
        %837 = vmatpush2.msra.mxu0 0.0
        %838 = vmatprep.subr.mxu0 0.0
        %839 = vmatpush2.msra.mxu0 0.0
        %840 = vmatprep.subr.mxu0 0.0
        %841 = vmatpush2.msra.mxu0 0.0
        %842 = vmatprep.subr.mxu0 0.0
        %843 = vmatpush2.msra.mxu0 0.0
        %844 = vmatprep.subr.mxu0 0.0
        %845 = vmatpush2.msra.mxu0 0.0
        %846 = vmatprep.subr.mxu0 0.0
        %847 = vmatpush2.msra.mxu0 0.0
        %848 = vmatprep.subr.mxu0 0.0
        %849 = vmatpush2.msra.mxu0 0.0
        %850 = vmatprep.subr.mxu0 0.0
        %851 = vmatpush2.msra.mxu0 0.0
        %852 = vmatprep.mubr.f32.mxu0 0.0
        %853 = vmatmul.mubr.f32.gmra.mxu0 %v786
        %v854 = vpop.f32.mrf.mxu0
        %v855 = vadd.f32 %v783, %v854
        %v856 = vpop.f32.mrf.mxu0
        %857 = vdwg.mxu0
        %v858 = vld [vmem:[%s572] sm:$0xff]
        %v859 = vld [vmem:[#allocation13] sm:$0xff]
        %v860 = vld [vmem:[#allocation13 + $0x8] sm:$0xff]
        %v861 = vld [vmem:[#allocation13 + $0x10] sm:$0xff]
        %v862 = vld [vmem:[#allocation13 + $0x18] sm:$0xff]
        %v863 = vld [vmem:[#allocation14] sm:$0x1]
        %v865 = vlaneseq
        %v866 = vshrl.u32 %v865, 7
        %v867 = vsub.s32 0, %v866
        %v868 = vrot.slane %v863, %v867
        %v871 = vsel %vm699, %v858, 0
        %873 = vmatprep.subr.mxu0 0.0
        %874 = vmatpush1.msra.mxu0 0.0
        %875 = vmatprep.subr.mxu0 0.0
        %876 = vmatpush1.msra.mxu0 0.0
        %877 = vmatprep.subr.mxu0 0.0
        %878 = vmatpush1.msra.mxu0 0.0
        %879 = vmatprep.subr.mxu0 0.0
        %880 = vmatpush1.msra.mxu0 0.0
        %881 = vmatprep.subr.mxu0 0.0
        %882 = vmatpush1.msra.mxu0 0.0
        %883 = vmatprep.subr.mxu0 0.0
        %884 = vmatpush1.msra.mxu0 0.0
        %885 = vmatprep.subr.mxu0 0.0
        %886 = vmatpush1.msra.mxu0 0.0
        %887 = vmatprep.subr.mxu0 0.0
        %888 = vmatpush1.msra.mxu0 0.0
        %889 = vmatprep.subr.mxu0 0.0
        %890 = vmatpush1.msra.mxu0 0.0
        %891 = vmatprep.subr.mxu0 0.0
        %892 = vmatpush1.msra.mxu0 0.0
        %893 = vmatprep.subr.mxu0 0.0
        %894 = vmatpush1.msra.mxu0 0.0
        %895 = vmatprep.subr.mxu0 0.0
        %896 = vmatpush1.msra.mxu0 0.0
        %897 = vmatprep.subr.mxu0 0.0
        %898 = vmatpush1.msra.mxu0 %v862
        %899 = vmatprep.subr.mxu0 0.0
        %900 = vmatpush1.msra.mxu0 %v861
        %901 = vmatprep.subr.mxu0 0.0
        %902 = vmatpush1.msra.mxu0 %v860
        %903 = vmatprep.subr.mxu0 0.0
        %904 = vmatpush1.msra.mxu0 %v859
        %905 = vmatprep.subr.mxu0 0.0
        %906 = vmatpush2.msra.mxu0 0.0
        %907 = vmatprep.subr.mxu0 0.0
        %908 = vmatpush2.msra.mxu0 0.0
        %909 = vmatprep.subr.mxu0 0.0
        %910 = vmatpush2.msra.mxu0 0.0
        %911 = vmatprep.subr.mxu0 0.0
        %912 = vmatpush2.msra.mxu0 0.0
        %913 = vmatprep.subr.mxu0 0.0
        %914 = vmatpush2.msra.mxu0 0.0
        %915 = vmatprep.subr.mxu0 0.0
        %916 = vmatpush2.msra.mxu0 0.0
        %917 = vmatprep.subr.mxu0 0.0
        %918 = vmatpush2.msra.mxu0 0.0
        %919 = vmatprep.subr.mxu0 0.0
        %920 = vmatpush2.msra.mxu0 0.0
        %921 = vmatprep.subr.mxu0 0.0
        %922 = vmatpush2.msra.mxu0 0.0
        %923 = vmatprep.subr.mxu0 0.0
        %924 = vmatpush2.msra.mxu0 0.0
        %925 = vmatprep.subr.mxu0 0.0
        %926 = vmatpush2.msra.mxu0 0.0
        %927 = vmatprep.subr.mxu0 0.0
        %928 = vmatpush2.msra.mxu0 0.0
        %929 = vmatprep.subr.mxu0 0.0
        %930 = vmatpush2.msra.mxu0 0.0
        %931 = vmatprep.subr.mxu0 0.0
        %932 = vmatpush2.msra.mxu0 0.0
        %933 = vmatprep.subr.mxu0 0.0
        %934 = vmatpush2.msra.mxu0 0.0
        %935 = vmatprep.subr.mxu0 0.0
        %936 = vmatpush2.msra.mxu0 0.0
        %937 = vmatprep.mubr.f32.mxu0 0.0
        %938 = vmatmul.mubr.f32.gmra.mxu0 %v871
        %v939 = vpop.f32.mrf.mxu0
        %v940 = vadd.f32 %v868, %v939
        %v941 = vpop.f32.mrf.mxu0
        %942 = vdwg.mxu0
        %v943 = vld [vmem:[%s581] sm:$0xff]
        %945 = vrot.lane.b32.xlu0 %v855, 16
        %v946 = vpop.permute.xlu0 %945
        %949 = vrot.lane.b32.xlu0 %v940, 32
        %v950 = vpop.permute.xlu0 %949
        %vm952 = vcmask 130048
        %v953 = vsel %vm952, %v770, %v946
        %v954 = vsel %vm699, %v953, %v950
        %956 = vrot.lane.b32.xlu0 %v770, 96
        %v957 = vpop.permute.xlu0 %956
        %959 = vrot.lane.b32.xlu0 %v855, 112
        %v960 = vpop.permute.xlu0 %959
        %v962 = vsel %vm952, %v957, %v960
        %v963 = vsel %vm699, %v962, %v940
        %vm964 = vcmask 392192
        %v966 = vsel %vm964, %v954, 0
        %v969 = vsel %vm964, %v963, 0
        %971 = vmatprep.subr.mxu0 0.0
        %972 = vmatpush1.xpose.msra.mxu0 0.0
        %973 = vmatprep.subr.mxu0 0.0
        %974 = vmatpush1.xpose.msra.mxu0 0.0
        %975 = vmatprep.subr.mxu0 0.0
        %976 = vmatpush1.xpose.msra.mxu0 0.0
        %977 = vmatprep.subr.mxu0 0.0
        %978 = vmatpush1.xpose.msra.mxu0 0.0
        %979 = vmatprep.subr.mxu0 0.0
        %980 = vmatpush1.xpose.msra.mxu0 0.0
        %981 = vmatprep.subr.mxu0 0.0
        %982 = vmatpush1.xpose.msra.mxu0 0.0
        %983 = vmatprep.subr.mxu0 0.0
        %984 = vmatpush1.xpose.msra.mxu0 0.0
        %985 = vmatprep.subr.mxu0 0.0
        %986 = vmatpush1.xpose.msra.mxu0 0.0
        %987 = vmatprep.subr.mxu0 0.0
        %988 = vmatpush1.xpose.msra.mxu0 0.0
        %989 = vmatprep.subr.mxu0 0.0
        %990 = vmatpush1.xpose.msra.mxu0 0.0
        %991 = vmatprep.subr.mxu0 0.0
        %992 = vmatpush1.xpose.msra.mxu0 0.0
        %993 = vmatprep.subr.mxu0 0.0
        %994 = vmatpush1.xpose.msra.mxu0 0.0
        %995 = vmatprep.subr.mxu0 0.0
        %996 = vmatpush1.xpose.msra.mxu0 0.0
        %997 = vmatprep.subr.mxu0 0.0
        %998 = vmatpush1.xpose.msra.mxu0 0.0
        %999 = vmatprep.subr.mxu0 0.0
        %1000 = vmatpush1.xpose.msra.mxu0 0.0
        %1001 = vmatprep.subr.mxu0 0.0
        %1002 = vmatpush1.xpose.msra.mxu0 %v969
        %1003 = vmatprep.subr.mxu0 0.0
        %1004 = vmatpush2.xpose.msra.mxu0 0.0
        %1005 = vmatprep.subr.mxu0 0.0
        %1006 = vmatpush2.xpose.msra.mxu0 0.0
        %1007 = vmatprep.subr.mxu0 0.0
        %1008 = vmatpush2.xpose.msra.mxu0 0.0
        %1009 = vmatprep.subr.mxu0 0.0
        %1010 = vmatpush2.xpose.msra.mxu0 0.0
        %1011 = vmatprep.subr.mxu0 0.0
        %1012 = vmatpush2.xpose.msra.mxu0 0.0
        %1013 = vmatprep.subr.mxu0 0.0
        %1014 = vmatpush2.xpose.msra.mxu0 0.0
        %1015 = vmatprep.subr.mxu0 0.0
        %1016 = vmatpush2.xpose.msra.mxu0 0.0
        %1017 = vmatprep.subr.mxu0 0.0
        %1018 = vmatpush2.xpose.msra.mxu0 0.0
        %1019 = vmatprep.subr.mxu0 0.0
        %1020 = vmatpush2.xpose.msra.mxu0 0.0
        %1021 = vmatprep.subr.mxu0 0.0
        %1022 = vmatpush2.xpose.msra.mxu0 0.0
        %1023 = vmatprep.subr.mxu0 0.0
        %1024 = vmatpush2.xpose.msra.mxu0 0.0
        %1025 = vmatprep.subr.mxu0 0.0
        %1026 = vmatpush2.xpose.msra.mxu0 0.0
        %1027 = vmatprep.subr.mxu0 0.0
        %1028 = vmatpush2.xpose.msra.mxu0 0.0
        %1029 = vmatprep.subr.mxu0 0.0
        %1030 = vmatpush2.xpose.msra.mxu0 0.0
        %1031 = vmatprep.subr.mxu0 0.0
        %1032 = vmatpush2.xpose.msra.mxu0 0.0
        %1033 = vmatprep.subr.mxu0 0.0
        %1034 = vmatpush2.xpose.msra.mxu0 0.0
        %1035 = vmatprep.mubr.f32.mxu0 0.0
        %1036 = vmatmul.mubr.f32.gmra.mxu0 %v966
        %v1037 = vpop.f32.mrf.mxu0
        %v1038 = vadd.f32 0.0, %v1037
        %v1039 = vpop.f32.mrf.mxu0
        %1040 = vdwg.mxu0
        %v1041 = vmul.f32 %v1038, 0.25
        %v1042 = vadd.f32 %v1041, %v943
        %vm1043 = vcmask 64512
        %v1044 = vsel %vm1043, %v1042, -inf
        %1045 = vmax.xlane.f32.xlu0 %v1044
        %v1046 = vpop.xlane.xlu0 %1045
        %v1047 = vsub.f32 %v1042, %v1046
        %v1048 = vmul.f32 %v1047, 1.442695
        %v1049 = vpow.pop %v1048
        %v1050 = vsel %vm1043, %v1049, 0.0
        %1051 = vadd.xlane.f32.xlu0 %v1050
        %v1052 = vpop.xlane.xlu0 %1051
        %v1053 = vrcp.pop %v1052
        %v1054 = vmul.f32 %v1049, %v1053
        %1055 = vrot.lane.b32.xlu0 %v770, 64
        %v1056 = vpop.permute.xlu0 %1055
        %v1059 = vsel %vm1043, %v1054, 0
        %1061 = vmatprep.subr.mxu0 0.0
        %1062 = vmatpush1.msra.mxu0 0.0
        %1063 = vmatprep.subr.mxu0 0.0
        %1064 = vmatpush1.msra.mxu0 0.0
        %1065 = vmatprep.subr.mxu0 0.0
        %1066 = vmatpush1.msra.mxu0 0.0
        %1067 = vmatprep.subr.mxu0 0.0
        %1068 = vmatpush1.msra.mxu0 0.0
        %1069 = vmatprep.subr.mxu0 0.0
        %1070 = vmatpush1.msra.mxu0 0.0
        %1071 = vmatprep.subr.mxu0 0.0
        %1072 = vmatpush1.msra.mxu0 0.0
        %1073 = vmatprep.subr.mxu0 0.0
        %1074 = vmatpush1.msra.mxu0 0.0
        %1075 = vmatprep.subr.mxu0 0.0
        %1076 = vmatpush1.msra.mxu0 0.0
        %1077 = vmatprep.subr.mxu0 0.0
        %1078 = vmatpush1.msra.mxu0 0.0
        %1079 = vmatprep.subr.mxu0 0.0
        %1080 = vmatpush1.msra.mxu0 0.0
        %1081 = vmatprep.subr.mxu0 0.0
        %1082 = vmatpush1.msra.mxu0 0.0
        %1083 = vmatprep.subr.mxu0 0.0
        %1084 = vmatpush1.msra.mxu0 0.0
        %1085 = vmatprep.subr.mxu0 0.0
        %1086 = vmatpush1.msra.mxu0 0.0
        %1087 = vmatprep.subr.mxu0 0.0
        %1088 = vmatpush1.msra.mxu0 0.0
        %1089 = vmatprep.subr.mxu0 0.0
        %1090 = vmatpush1.msra.mxu0 0.0
        %1091 = vmatprep.subr.mxu0 0.0
        %1092 = vmatpush1.msra.mxu0 %v1056
        %1093 = vmatprep.subr.mxu0 0.0
        %1094 = vmatpush2.msra.mxu0 0.0
        %1095 = vmatprep.subr.mxu0 0.0
        %1096 = vmatpush2.msra.mxu0 0.0
        %1097 = vmatprep.subr.mxu0 0.0
        %1098 = vmatpush2.msra.mxu0 0.0
        %1099 = vmatprep.subr.mxu0 0.0
        %1100 = vmatpush2.msra.mxu0 0.0
        %1101 = vmatprep.subr.mxu0 0.0
        %1102 = vmatpush2.msra.mxu0 0.0
        %1103 = vmatprep.subr.mxu0 0.0
        %1104 = vmatpush2.msra.mxu0 0.0
        %1105 = vmatprep.subr.mxu0 0.0
        %1106 = vmatpush2.msra.mxu0 0.0
        %1107 = vmatprep.subr.mxu0 0.0
        %1108 = vmatpush2.msra.mxu0 0.0
        %1109 = vmatprep.subr.mxu0 0.0
        %1110 = vmatpush2.msra.mxu0 0.0
        %1111 = vmatprep.subr.mxu0 0.0
        %1112 = vmatpush2.msra.mxu0 0.0
        %1113 = vmatprep.subr.mxu0 0.0
        %1114 = vmatpush2.msra.mxu0 0.0
        %1115 = vmatprep.subr.mxu0 0.0
        %1116 = vmatpush2.msra.mxu0 0.0
        %1117 = vmatprep.subr.mxu0 0.0
        %1118 = vmatpush2.msra.mxu0 0.0
        %1119 = vmatprep.subr.mxu0 0.0
        %1120 = vmatpush2.msra.mxu0 0.0
        %1121 = vmatprep.subr.mxu0 0.0
        %1122 = vmatpush2.msra.mxu0 0.0
        %1123 = vmatprep.subr.mxu0 0.0
        %1124 = vmatpush2.msra.mxu0 0.0
        %1125 = vmatprep.mubr.f32.mxu0 0.0
        %1126 = vmatmul.mubr.f32.gmra.mxu0 %v1059
        %v1127 = vpop.f32.mrf.mxu0
        %v1128 = vadd.f32 0.0, %v1127
        %v1129 = vpop.f32.mrf.mxu0
        %1130 = vdwg.mxu0
        %1131 = vrot.lane.b32.xlu0 %v770, 112
        %v1132 = vpop.permute.xlu0 %1131
        %1134 = vrot.lane.b32.xlu0 %v940, 16
        %v1135 = vpop.permute.xlu0 %1134
        %v1137 = vsel %vm952, %v1132, %v855
        %v1138 = vsel %vm699, %v1137, %v1135
        %1139 = vrot.lane.b32.xlu0 %v770, 80
        %v1140 = vpop.permute.xlu0 %1139
        %1142 = vrot.lane.b32.xlu0 %v855, 96
        %v1143 = vpop.permute.xlu0 %1142
        %1145 = vrot.lane.b32.xlu0 %v940, 112
        %v1146 = vpop.permute.xlu0 %1145
        %v1148 = vsel %vm952, %v1140, %v1143
        %v1149 = vsel %vm699, %v1148, %v1146
        %v1151 = vsel %vm964, %v1138, 0
        %v1154 = vsel %vm964, %v1149, 0
        %1156 = vmatprep.subr.mxu0 0.0
        %1157 = vmatpush1.xpose.msra.mxu0 0.0
        %1158 = vmatprep.subr.mxu0 0.0
        %1159 = vmatpush1.xpose.msra.mxu0 0.0
        %1160 = vmatprep.subr.mxu0 0.0
        %1161 = vmatpush1.xpose.msra.mxu0 0.0
        %1162 = vmatprep.subr.mxu0 0.0
        %1163 = vmatpush1.xpose.msra.mxu0 0.0
        %1164 = vmatprep.subr.mxu0 0.0
        %1165 = vmatpush1.xpose.msra.mxu0 0.0
        %1166 = vmatprep.subr.mxu0 0.0
        %1167 = vmatpush1.xpose.msra.mxu0 0.0
        %1168 = vmatprep.subr.mxu0 0.0
        %1169 = vmatpush1.xpose.msra.mxu0 0.0
        %1170 = vmatprep.subr.mxu0 0.0
        %1171 = vmatpush1.xpose.msra.mxu0 0.0
        %1172 = vmatprep.subr.mxu0 0.0
        %1173 = vmatpush1.xpose.msra.mxu0 0.0
        %1174 = vmatprep.subr.mxu0 0.0
        %1175 = vmatpush1.xpose.msra.mxu0 0.0
        %1176 = vmatprep.subr.mxu0 0.0
        %1177 = vmatpush1.xpose.msra.mxu0 0.0
        %1178 = vmatprep.subr.mxu0 0.0
        %1179 = vmatpush1.xpose.msra.mxu0 0.0
        %1180 = vmatprep.subr.mxu0 0.0
        %1181 = vmatpush1.xpose.msra.mxu0 0.0
        %1182 = vmatprep.subr.mxu0 0.0
        %1183 = vmatpush1.xpose.msra.mxu0 0.0
        %1184 = vmatprep.subr.mxu0 0.0
        %1185 = vmatpush1.xpose.msra.mxu0 0.0
        %1186 = vmatprep.subr.mxu0 0.0
        %1187 = vmatpush1.xpose.msra.mxu0 %v1154
        %1188 = vmatprep.subr.mxu0 0.0
        %1189 = vmatpush2.xpose.msra.mxu0 0.0
        %1190 = vmatprep.subr.mxu0 0.0
        %1191 = vmatpush2.xpose.msra.mxu0 0.0
        %1192 = vmatprep.subr.mxu0 0.0
        %1193 = vmatpush2.xpose.msra.mxu0 0.0
        %1194 = vmatprep.subr.mxu0 0.0
        %1195 = vmatpush2.xpose.msra.mxu0 0.0
        %1196 = vmatprep.subr.mxu0 0.0
        %1197 = vmatpush2.xpose.msra.mxu0 0.0
        %1198 = vmatprep.subr.mxu0 0.0
        %1199 = vmatpush2.xpose.msra.mxu0 0.0
        %1200 = vmatprep.subr.mxu0 0.0
        %1201 = vmatpush2.xpose.msra.mxu0 0.0
        %1202 = vmatprep.subr.mxu0 0.0
        %1203 = vmatpush2.xpose.msra.mxu0 0.0
        %1204 = vmatprep.subr.mxu0 0.0
        %1205 = vmatpush2.xpose.msra.mxu0 0.0
        %1206 = vmatprep.subr.mxu0 0.0
        %1207 = vmatpush2.xpose.msra.mxu0 0.0
        %1208 = vmatprep.subr.mxu0 0.0
        %1209 = vmatpush2.xpose.msra.mxu0 0.0
        %1210 = vmatprep.subr.mxu0 0.0
        %1211 = vmatpush2.xpose.msra.mxu0 0.0
        %1212 = vmatprep.subr.mxu0 0.0
        %1213 = vmatpush2.xpose.msra.mxu0 0.0
        %1214 = vmatprep.subr.mxu0 0.0
        %1215 = vmatpush2.xpose.msra.mxu0 0.0
        %1216 = vmatprep.subr.mxu0 0.0
        %1217 = vmatpush2.xpose.msra.mxu0 0.0
        %1218 = vmatprep.subr.mxu0 0.0
        %1219 = vmatpush2.xpose.msra.mxu0 0.0
        %1220 = vmatprep.mubr.f32.mxu0 0.0
        %1221 = vmatmul.mubr.f32.gmra.mxu0 %v1151
        %v1222 = vpop.f32.mrf.mxu0
        %v1223 = vadd.f32 0.0, %v1222
        %v1224 = vpop.f32.mrf.mxu0
        %1225 = vdwg.mxu0
        %v1226 = vmul.f32 %v1223, 0.25
        %v1227 = vadd.f32 %v1226, %v943
        %v1228 = vsel %vm1043, %v1227, -inf
        %1229 = vmax.xlane.f32.xlu0 %v1228
        %v1230 = vpop.xlane.xlu0 %1229
        %v1231 = vsub.f32 %v1227, %v1230
        %v1232 = vmul.f32 %v1231, 1.442695
        %v1233 = vpow.pop %v1232
        %v1234 = vsel %vm1043, %v1233, 0.0
        %1235 = vadd.xlane.f32.xlu0 %v1234
        %v1236 = vpop.xlane.xlu0 %1235
        %v1237 = vrcp.pop %v1236
        %v1238 = vmul.f32 %v1233, %v1237
        %1239 = vrot.lane.b32.xlu0 %v770, 48
        %v1240 = vpop.permute.xlu0 %1239
        %v1243 = vsel %vm1043, %v1238, 0
        %1245 = vmatprep.subr.mxu0 0.0
        %1246 = vmatpush1.msra.mxu0 0.0
        %1247 = vmatprep.subr.mxu0 0.0
        %1248 = vmatpush1.msra.mxu0 0.0
        %1249 = vmatprep.subr.mxu0 0.0
        %1250 = vmatpush1.msra.mxu0 0.0
        %1251 = vmatprep.subr.mxu0 0.0
        %1252 = vmatpush1.msra.mxu0 0.0
        %1253 = vmatprep.subr.mxu0 0.0
        %1254 = vmatpush1.msra.mxu0 0.0
        %1255 = vmatprep.subr.mxu0 0.0
        %1256 = vmatpush1.msra.mxu0 0.0
        %1257 = vmatprep.subr.mxu0 0.0
        %1258 = vmatpush1.msra.mxu0 0.0
        %1259 = vmatprep.subr.mxu0 0.0
        %1260 = vmatpush1.msra.mxu0 0.0
        %1261 = vmatprep.subr.mxu0 0.0
        %1262 = vmatpush1.msra.mxu0 0.0
        %1263 = vmatprep.subr.mxu0 0.0
        %1264 = vmatpush1.msra.mxu0 0.0
        %1265 = vmatprep.subr.mxu0 0.0
        %1266 = vmatpush1.msra.mxu0 0.0
        %1267 = vmatprep.subr.mxu0 0.0
        %1268 = vmatpush1.msra.mxu0 0.0
        %1269 = vmatprep.subr.mxu0 0.0
        %1270 = vmatpush1.msra.mxu0 0.0
        %1271 = vmatprep.subr.mxu0 0.0
        %1272 = vmatpush1.msra.mxu0 0.0
        %1273 = vmatprep.subr.mxu0 0.0
        %1274 = vmatpush1.msra.mxu0 0.0
        %1275 = vmatprep.subr.mxu0 0.0
        %1276 = vmatpush1.msra.mxu0 %v1240
        %1277 = vmatprep.subr.mxu0 0.0
        %1278 = vmatpush2.msra.mxu0 0.0
        %1279 = vmatprep.subr.mxu0 0.0
        %1280 = vmatpush2.msra.mxu0 0.0
        %1281 = vmatprep.subr.mxu0 0.0
        %1282 = vmatpush2.msra.mxu0 0.0
        %1283 = vmatprep.subr.mxu0 0.0
        %1284 = vmatpush2.msra.mxu0 0.0
        %1285 = vmatprep.subr.mxu0 0.0
        %1286 = vmatpush2.msra.mxu0 0.0
        %1287 = vmatprep.subr.mxu0 0.0
        %1288 = vmatpush2.msra.mxu0 0.0
        %1289 = vmatprep.subr.mxu0 0.0
        %1290 = vmatpush2.msra.mxu0 0.0
        %1291 = vmatprep.subr.mxu0 0.0
        %1292 = vmatpush2.msra.mxu0 0.0
        %1293 = vmatprep.subr.mxu0 0.0
        %1294 = vmatpush2.msra.mxu0 0.0
        %1295 = vmatprep.subr.mxu0 0.0
        %1296 = vmatpush2.msra.mxu0 0.0
        %1297 = vmatprep.subr.mxu0 0.0
        %1298 = vmatpush2.msra.mxu0 0.0
        %1299 = vmatprep.subr.mxu0 0.0
        %1300 = vmatpush2.msra.mxu0 0.0
        %1301 = vmatprep.subr.mxu0 0.0
        %1302 = vmatpush2.msra.mxu0 0.0
        %1303 = vmatprep.subr.mxu0 0.0
        %1304 = vmatpush2.msra.mxu0 0.0
        %1305 = vmatprep.subr.mxu0 0.0
        %1306 = vmatpush2.msra.mxu0 0.0
        %1307 = vmatprep.subr.mxu0 0.0
        %1308 = vmatpush2.msra.mxu0 0.0
        %1309 = vmatprep.mubr.f32.mxu0 0.0
        %1310 = vmatmul.mubr.f32.gmra.mxu0 %v1243
        %v1311 = vpop.f32.mrf.mxu0
        %v1312 = vadd.f32 0.0, %v1311
        %v1313 = vpop.f32.mrf.mxu0
        %1314 = vdwg.mxu0
        %1316 = vrot.lane.b32.xlu0 %v1312, 16
        %v1317 = vpop.permute.xlu0 %1316
        %v1319 = vsel %vm952, %v1128, %v1317
        %v1320 = vld [vmem:[#allocation16] sm:$0xff]
        %v1321 = vld [vmem:[#allocation16 + $0x8] sm:$0xff]
        %v1322 = vld [vmem:[#allocation16 + $0x10] sm:$0xff]
        %v1323 = vld [vmem:[#allocation16 + $0x18] sm:$0xff]
        %v1324 = vld [vmem:[#allocation17] sm:$0x1]
        %v1326 = vlaneseq
        %v1327 = vshrl.u32 %v1326, 7
        %v1328 = vsub.s32 0, %v1327
        %v1329 = vrot.slane %v1324, %v1328
        %v1332 = vsel %vm699, %v1319, 0
        %1334 = vmatprep.subr.mxu0 0.0
        %1335 = vmatpush1.msra.mxu0 0.0
        %1336 = vmatprep.subr.mxu0 0.0
        %1337 = vmatpush1.msra.mxu0 0.0
        %1338 = vmatprep.subr.mxu0 0.0
        %1339 = vmatpush1.msra.mxu0 0.0
        %1340 = vmatprep.subr.mxu0 0.0
        %1341 = vmatpush1.msra.mxu0 0.0
        %1342 = vmatprep.subr.mxu0 0.0
        %1343 = vmatpush1.msra.mxu0 0.0
        %1344 = vmatprep.subr.mxu0 0.0
        %1345 = vmatpush1.msra.mxu0 0.0
        %1346 = vmatprep.subr.mxu0 0.0
        %1347 = vmatpush1.msra.mxu0 0.0
        %1348 = vmatprep.subr.mxu0 0.0
        %1349 = vmatpush1.msra.mxu0 0.0
        %1350 = vmatprep.subr.mxu0 0.0
        %1351 = vmatpush1.msra.mxu0 0.0
        %1352 = vmatprep.subr.mxu0 0.0
        %1353 = vmatpush1.msra.mxu0 0.0
        %1354 = vmatprep.subr.mxu0 0.0
        %1355 = vmatpush1.msra.mxu0 0.0
        %1356 = vmatprep.subr.mxu0 0.0
        %1357 = vmatpush1.msra.mxu0 0.0
        %1358 = vmatprep.subr.mxu0 0.0
        %1359 = vmatpush1.msra.mxu0 %v1323
        %1360 = vmatprep.subr.mxu0 0.0
        %1361 = vmatpush1.msra.mxu0 %v1322
        %1362 = vmatprep.subr.mxu0 0.0
        %1363 = vmatpush1.msra.mxu0 %v1321
        %1364 = vmatprep.subr.mxu0 0.0
        %1365 = vmatpush1.msra.mxu0 %v1320
        %1366 = vmatprep.subr.mxu0 0.0
        %1367 = vmatpush2.msra.mxu0 0.0
        %1368 = vmatprep.subr.mxu0 0.0
        %1369 = vmatpush2.msra.mxu0 0.0
        %1370 = vmatprep.subr.mxu0 0.0
        %1371 = vmatpush2.msra.mxu0 0.0
        %1372 = vmatprep.subr.mxu0 0.0
        %1373 = vmatpush2.msra.mxu0 0.0
        %1374 = vmatprep.subr.mxu0 0.0
        %1375 = vmatpush2.msra.mxu0 0.0
        %1376 = vmatprep.subr.mxu0 0.0
        %1377 = vmatpush2.msra.mxu0 0.0
        %1378 = vmatprep.subr.mxu0 0.0
        %1379 = vmatpush2.msra.mxu0 0.0
        %1380 = vmatprep.subr.mxu0 0.0
        %1381 = vmatpush2.msra.mxu0 0.0
        %1382 = vmatprep.subr.mxu0 0.0
        %1383 = vmatpush2.msra.mxu0 0.0
        %1384 = vmatprep.subr.mxu0 0.0
        %1385 = vmatpush2.msra.mxu0 0.0
        %1386 = vmatprep.subr.mxu0 0.0
        %1387 = vmatpush2.msra.mxu0 0.0
        %1388 = vmatprep.subr.mxu0 0.0
        %1389 = vmatpush2.msra.mxu0 0.0
        %1390 = vmatprep.subr.mxu0 0.0
        %1391 = vmatpush2.msra.mxu0 0.0
        %1392 = vmatprep.subr.mxu0 0.0
        %1393 = vmatpush2.msra.mxu0 0.0
        %1394 = vmatprep.subr.mxu0 0.0
        %1395 = vmatpush2.msra.mxu0 0.0
        %1396 = vmatprep.subr.mxu0 0.0
        %1397 = vmatpush2.msra.mxu0 0.0
        %1398 = vmatprep.mubr.f32.mxu0 0.0
        %1399 = vmatmul.mubr.f32.gmra.mxu0 %v1332
        %v1400 = vpop.f32.mrf.mxu0
        %v1401 = vadd.f32 %v1329, %v1400
        %v1402 = vpop.f32.mrf.mxu0
        %1403 = vdwg.mxu0
        %v1404 = vadd.f32 %v1401, %v687
        %v1405 = vsel %vm699, %v1404, 0.0
        %1406 = vadd.xlane.f32.xlu0 %v1405
        %v1407 = vpop.xlane.xlu0 %1406
        %v1408 = vrcp.pop 32.0
        %v1409 = vmul.f32 %v1407, %v1408
        %v1410 = vsub.f32 %v1404, %v1409
        %v1411 = vmul.f32 %v1410, %v1410
        %v1412 = vsel %vm699, %v1411, 0.0
        %1413 = vadd.xlane.f32.xlu0 %v1412
        %v1414 = vpop.xlane.xlu0 %1413
        %v1415 = vmul.f32 %v1414, %v1408
        %v1416 = vadd.f32 %v1415, 1e-12
        %v1417 = vrsqrt.pop %v1416
        %v1418 = vmul.f32 %v1410, %v1417
        %v1419 = vld [vmem:[#allocation19] sm:$0x1]
        %v1421 = vlaneseq
        %v1422 = vshrl.u32 %v1421, 7
        %v1423 = vsub.s32 0, %v1422
        %v1424 = vrot.slane %v1419, %v1423
        %v1426 = vmul.f32 %v1418, %v1424
        %v1427 = vld [vmem:[#allocation20] sm:$0x1]
        %v1429 = vlaneseq
        %v1430 = vshrl.u32 %v1429, 7
        %v1431 = vsub.s32 0, %v1430
        %v1432 = vrot.slane %v1427, %v1431
        %v1434 = vadd.f32 %v1426, %v1432
        %1435 = vst.msk [vmem:[%s678] sm:$0xff] %vm699, %v1434
        %s1436 = sand.u32 %s361, 1
        %s1437 = scalar_lea.sflag [#allocation4], %s1436
        %s1438 = sand.u32 %s361, 1
        %s1439 = smul.addr %s1438, 8
        %s1440 = scalar_lea.vmem [#allocation22], %s1439
        // Predicated region
        $region125: #{dif_multi_head_attention.1} parent=75 // pred_check
          %p1441 = pneg %p371
        $region126: #{dif_multi_head_attention.1} parent=75 // pred_check_branch
          %1443 = sbr.rel (%p1441) target = $region128
        $region127: #{dif_multi_head_attention.1} parent=75 // pred_region
          %s1445 = ssub.s32 128, 128
          %1446 = vsyncadd %s1437, %s1445
          %s1447 = smul.addr %s39, 128
          %s1448 = scalar_lea.hbm %s14, %s1447
          %s1450 = sshll.u32 %s1440, 4
          %s1451 = int_to_ptr.vmem [resolvable:$true] %s1450
          %1453 = dma.vmem_to_hbm [thread:$0]  %s1451, 128, %s1448, %s1437
        $region128: #{dif_multi_head_attention.1} parent=75 // pred_fallthru
          _
      $region76: #{dif_multi_head_attention.1} parent=5 // pred_fallthru
        _
      %p1454 = scmp.le.s32.totalorder 2, %s34
      // Predicated region
      $region129: #{dif_multi_head_attention.1} parent=5 // pred_check
        %p1455 = pneg %p1454
      $region130: #{dif_multi_head_attention.1} parent=5 // pred_check_branch
        %1457 = sbr.rel (%p1455) target = $region132
      $region131: #{dif_multi_head_attention.1} parent=5 // pred_region
        %s1458 = ssub.s32 %s34, 2
        // Predicated region
        $region133: #{dif_multi_head_attention.1} parent=131 // pred_check
          %p1459 = pneg %p377
        $region134: #{dif_multi_head_attention.1} parent=131 // pred_check_branch
          %1461 = sbr.rel (%p1459) target = $region136
        $region135: #{dif_multi_head_attention.1} parent=131 // pred_region
          %s1462 = sand.u32 %s362, 1
          %s1463 = scalar_lea.sflag [#allocation4], %s1462
          %s1464 = sand.u32 %s362, 1
          %s1465 = smul.addr %s1464, 8
          %s1466 = scalar_lea.vmem [#allocation22], %s1465
          %1467 = dma.done %s1463, 128
        $region136: #{dif_multi_head_attention.1} parent=131 // pred_fallthru
          _
      $region132: #{dif_multi_head_attention.1} parent=5 // pred_fallthru
        _
    $region6: #{dif_multi_head_attention.1} parent=1 // loop_footer
      %s38 = sadd.s32 1, %s34
    $region7: #{dif_multi_head_attention.1} parent=1 // loop_footer_branch
      %33 = sbr.rel target = $region3
    $region8: #{dif_multi_head_attention.1} parent=1 // loop_exit
      _
    %1468 = vsyncpa [#allocation3], 1
    %s1469 = scalar_lea.sflag [#allocation3], 1
    %1470 = vsyncpa %s1469, 1
    %1471 = vsyncpa [#allocation6], 1
    %s1472 = scalar_lea.sflag [#allocation6], 1
    %1473 = vsyncpa %s1472, 1
    %1474 = vsyncpa [#allocation9], 1
    %1475 = vsyncpa [#allocation12], 1
    %1476 = vsyncpa [#allocation15], 1
    %1477 = vsyncpa [#allocation18], 1
    %1478 = vsyncpa [#allocation21], 1
    %1479 = vsyncpa [#allocation4], 1
    %s1480 = scalar_lea.sflag [#allocation4], 1
    %1481 = vsyncpa %s1480, 1

</llo_original>
